<compile_context>
chip_gen: v5e
topology: v5e:2x2
jax: 0.10.0
libtpu: 0.0.40
codegen_flags: <defaults>
</compile_context>

<pallas_src>
import jax
import jax.numpy as jnp
from jax import lax
from jax.experimental import pallas as pl
from jax.experimental.pallas import tpu as pltpu


LANE = 128   # channel dims padded to a multiple of the 128-lane axis
TM = 128     # rows per matmul / accumulator tile (bounds vreg pressure)


# ----------------------------------------------------------------------------- helpers
def _same_pad_amounts(kernel_size: int):
    # Conv1dSamePadding (stride=1, dilation=1): total pad = K - 1; the extra
    # element (odd total) goes to the RIGHT (F.pad(input, [0, 1])).
    total = kernel_size - 1
    left = total // 2
    return left, total - left


def _round_up(x: int, m: int) -> int:
    return ((x + m - 1) // m) * m


# ----------------------------------------------------------------------------- kernel
def _make_fused_kernel(n_convs, use_residual, b_tile, L, C, Sp, left_max, right_max):
    """Fused InceptionBlock kernel for one grid step of `b_tile` batch elements.

    Slab layout (both ping-pong slabs, bf16):
      physical rows = [top margin: left_max] + b_tile sub-slabs of pitch Sp
                      (+ bottom margin / alignment slack).
      Element b's L data rows start at physical row  top + b*Sp + left_max.
      Invariant between convs: every element's left_max/right_max halo rows are
      zero; margin/slack rows are arbitrary (they only feed discarded rows).
    """
    top = left_max            # top margin rows
    M = b_tile * Sp           # folded matmul M (valid rows + per-element halos)

    def zero_halos(slab):
        # Re-establish the slab invariant (zero halo rows of every element).
        if left_max:
            zl = jnp.zeros((left_max, C), slab.dtype)
        if right_max:
            zr = jnp.zeros((right_max, C), slab.dtype)
        for b in range(b_tile):
            base = top + b * Sp
            if left_max:
                slab[base:base + left_max, :] = zl
            if right_max:
                slab[base + left_max + L:base + left_max + L + right_max, :] = zr

    def conv_folded(src, dst, w_ref):
        # SAME conv over ALL folded rows (valid + halo); halo outputs are
        # garbage and get re-zeroed below.  Per-tap MXU matmuls, f32 accum.
        K = w_ref.shape[0]
        l = (K - 1) // 2
        for m0 in range(0, M, TM):
            mt = min(TM, M - m0)
            s0 = top + m0 - l
            acc = jnp.dot(src[s0:s0 + mt, :], w_ref[0],
                          preferred_element_type=jnp.float32)
            for k in range(1, K):
                acc = acc + jnp.dot(src[s0 + k:s0 + k + mt, :], w_ref[k],
                                    preferred_element_type=jnp.float32)
            dst[top + m0:top + m0 + mt, :] = acc.astype(dst.dtype)
        if K > 1:
            zero_halos(dst)
        # (K == 1 maps zero halos to zero halos, so no re-zero is needed.)

    def kernel(*refs):
        x_ref = refs[0]                        # (b_tile, L, C) bf16 input
        w_refs = refs[1:1 + n_convs]           # (K_j, C, C) bf16 conv weights
        idx = 1 + n_convs
        if use_residual:
            wr_ref = refs[idx]                 # (1, C, C) bf16 residual 1x1
            scale_ref = refs[idx + 1]          # (1, C) f32 folded eval-BN scale
            shift_ref = refs[idx + 2]          # (1, C) f32 folded eval-BN shift
            idx += 3
        o_ref = refs[idx]                      # (b_tile, L, C) f32 output
        slabs = [refs[idx + 1], refs[idx + 2]] # two bf16 ping-pong slabs

        # ---- stage input into slab 0 (data rows) + zero per-element halos
        for b in range(b_tile):
            base = top + b * Sp
            slabs[0][base + left_max:base + left_max + L, :] = x_ref[b]
        zero_halos(slabs[0])

        # ---- all convs except the last: batch-folded, M-tiled, slab -> slab
        src = 0
        for j in range(n_convs - 1):
            conv_folded(slabs[src], slabs[1 - src], w_refs[j])
            src = 1 - src

        # ---- last conv + residual + store: fused per-element epilogue
        wl = w_refs[n_convs - 1]
        K = wl.shape[0]
        l = (K - 1) // 2
        for b in range(b_tile):
            base = top + b * Sp + left_max     # first data row of element b
            for t0 in range(0, L, TM):
                mt = min(TM, L - t0)
                s0 = base + t0 - l
                acc = jnp.dot(slabs[src][s0:s0 + mt, :], wl[0],
                              preferred_element_type=jnp.float32)
                for k in range(1, K):
                    acc = acc + jnp.dot(slabs[src][s0 + k:s0 + k + mt, :], wl[k],
                                        preferred_element_type=jnp.float32)
                if use_residual:
                    # relu(bn(conv1x1(org_x))) + main path, fused in the epilogue.
                    res = jnp.dot(x_ref[b, t0:t0 + mt, :], wr_ref[0],
                                  preferred_element_type=jnp.float32)
                    res = jnp.maximum(res * scale_ref[...] + shift_ref[...], 0.0)
                    acc = acc + res
                o_ref[b, t0:t0 + mt, :] = acc.astype(o_ref.dtype)

    return kernel


# ----------------------------------------------------------------------------- param prep
def prepare_params(p: dict) -> dict:
    """One-time conversion of PyTorch-layout params to kernel-ready layout.

    Hoists weight transposes ((O,I,K) -> (K,I,O)), bf16 casts, channel padding
    to the lane width and the BN scale/shift folding out of the forward path.
    """
    all_ws = list(p["w_convs_pt"])
    if p["use_bottleneck"]:
        all_ws = [p["w_bottleneck_pt"]] + all_ws
    if p["use_residual"]:
        all_ws = all_ws + [p["w_res_pt"]]
    c_max = max(max(w.shape[0], w.shape[1]) for w in all_ws)
    c_pad = _round_up(max(c_max, LANE), LANE)

    def prep_w(w_oik):
        o, i, _ = w_oik.shape
        w = jnp.transpose(w_oik, (2, 1, 0)).astype(jnp.bfloat16)   # (K, Cin, Cout)
        return jnp.pad(w, ((0, 0), (0, c_pad - i), (0, c_pad - o)))

    conv_ws = []
    if p["use_bottleneck"]:
        conv_ws.append(prep_w(p["w_bottleneck_pt"]))
    conv_ws += [prep_w(w) for w in p["w_convs_pt"]]

    c_out = p["w_convs_pt"][-1].shape[0]
    kp = {
        "use_residual": p["use_residual"],
        "conv_ws": conv_ws,
        "c_pad": c_pad,
        "c_out": c_out,
    }
    if p["use_residual"]:
        kp["w_res"] = prep_w(p["w_res_pt"])
        kp["scale"] = jnp.pad(p["res_scale"], (0, c_pad - c_out)).reshape(1, c_pad)
        kp["shift"] = jnp.pad(p["res_shift"], (0, c_pad - c_out)).reshape(1, c_pad)
    return kp


# ----------------------------------------------------------------------------- forward
def inception_block_forward(x_ncl: jax.Array, kp: dict) -> jax.Array:
    """Matches InceptionBlock.forward. Input/output in PyTorch NCL layout."""
    # TODO(synk): stride != 1 not implemented (module default stride=1).
    N, c_in, L = x_ncl.shape
    C = kp["c_pad"]
    conv_ws = kp["conv_ws"]
    use_residual = kp["use_residual"]

    # Layout plumbing (tiny, once per forward): NCL -> NLC, lane-pad channels,
    # bf16 in HBM (input is only ever consumed as a bf16 matmul operand).
    x = jnp.transpose(x_ncl, (0, 2, 1)).astype(jnp.bfloat16)
    x = jnp.pad(x, ((0, 0), (0, 0), (0, C - c_in)))

    k_max = max(w.shape[0] for w in conv_ws)
    left_max = (k_max - 1) // 2
    right_max = k_max - 1 - left_max
    Sp = _round_up(L + k_max - 1, 8)               # per-element slab pitch

    # Batch folding: several elements per grid step (amortizes per-step
    # overhead, gives the MXU M = b_tile*Sp rows per tap instead of L).
    b_tile = max(1, min(N, 1024 // max(Sp, 1)))
    while N % b_tile:
        b_tile -= 1
    n_steps = N // b_tile

    # Slab rows: top/bottom margin (halo reach of discarded rows) + folded rows.
    H = _round_up(b_tile * Sp + k_max - 1, 16)

    in_specs = [pl.BlockSpec((b_tile, L, C), lambda n: (n, 0, 0))]
    inputs = [x]
    for w in conv_ws:
        # Constant index map -> weights are not re-fetched across grid steps.
        in_specs.append(pl.BlockSpec((w.shape[0], C, C), lambda n: (0, 0, 0)))
        inputs.append(w)
    if use_residual:
        in_specs += [
            pl.BlockSpec((1, C, C), lambda n: (0, 0, 0)),
            pl.BlockSpec((1, C), lambda n: (0, 0)),
            pl.BlockSpec((1, C), lambda n: (0, 0)),
        ]
        inputs += [kp["w_res"], kp["scale"], kp["shift"]]

    kernel = _make_fused_kernel(len(conv_ws), use_residual, b_tile, L, C,
                                Sp, left_max, right_max)

    out = pl.pallas_call(
        kernel,
        out_shape=jax.ShapeDtypeStruct((N, L, C), jnp.float32),
        grid=(n_steps,),
        in_specs=in_specs,
        out_specs=pl.BlockSpec((b_tile, L, C), lambda n: (n, 0, 0)),
        scratch_shapes=[pltpu.VMEM((H, C), jnp.bfloat16),   # ping-pong slab A
                        pltpu.VMEM((H, C), jnp.bfloat16)],  # ping-pong slab B
        compiler_params=pltpu.CompilerParams(dimension_semantics=("parallel",)),
    )(*inputs)

    # Slice away lane padding and return to PyTorch NCL layout.
    return jnp.transpose(out[:, :, :kp["c_out"]], (0, 2, 1))


# ----------------------------------------------------------------------------- params
def init_params(key, in_channels, out_channels, bottleneck_channels, kernel_size,
                residual=True):
    kernel_size_s = [kernel_size // (2 ** i) for i in range(3)]
    keys = jax.random.split(key, 8)

    def conv_w(k, o, i, kk):
        return (jax.random.normal(k, (o, i, kk), jnp.float32)
                / jnp.sqrt(float(i * kk)))

    use_bottleneck = bottleneck_channels > 0
    start_c = bottleneck_channels if use_bottleneck else in_channels
    channels = [start_c, out_channels, out_channels, out_channels]

    p = {
        "use_bottleneck": use_bottleneck,
        "use_residual": residual,
        "w_convs_pt": [conv_w(keys[1 + j], channels[j + 1], channels[j],
                              kernel_size_s[j]) for j in range(3)],
    }
    if use_bottleneck:
        p["w_bottleneck_pt"] = conv_w(keys[0], bottleneck_channels, in_channels, 1)
    if residual:
        p["w_res_pt"] = conv_w(keys[4], out_channels, in_channels, 1)
        # BatchNorm1d (eval mode) on the residual branch — folded running stats.
        gamma = jax.random.uniform(keys[5], (out_channels,), jnp.float32, 0.5, 1.5)
        beta = jax.random.normal(keys[6], (out_channels,), jnp.float32) * 0.1
        run_mean = jax.random.normal(keys[7], (out_channels,), jnp.float32) * 0.1
        run_var = jnp.linspace(0.5, 1.5, out_channels).astype(jnp.float32)
        eps = 1e-5
        scale = gamma / jnp.sqrt(run_var + eps)
        p["res_scale"] = scale
        p["res_shift"] = beta - run_mean * scale
    return p


# ----------------------------------------------------------------------------- reference
def _ref_conv1d_same(x_ncl, w_oik):
    K = w_oik.shape[2]
    left, right = _same_pad_amounts(K)
    x_pad = jnp.pad(x_ncl, ((0, 0), (0, 0), (left, right)))
    return lax.conv_general_dilated(
        x_pad, w_oik, window_strides=(1,), padding="VALID",
        dimension_numbers=("NCH", "OIH", "NCH"),
        precision=lax.Precision.HIGHEST)


def ref_forward(x_ncl, p):
    org = x_ncl
    x = x_ncl
    if p["use_bottleneck"]:
        x = _ref_conv1d_same(x, p["w_bottleneck_pt"])
    for w in p["w_convs_pt"]:
        x = _ref_conv1d_same(x, w)
    if p["use_residual"]:
        r = _ref_conv1d_same(org, p["w_res_pt"])
        r = r * p["res_scale"][None, :, None] + p["res_shift"][None, :, None]
        r = jnp.maximum(r, 0.0)
        x = x + r
    return x


# ----------------------------------------------------------------------------- main
if __name__ == "__main__":
    key = jax.random.PRNGKey(0)
    kx, kparam = jax.random.split(key)

    # Small, module-consistent shapes.
    N, C_IN, L = 2, 4, 16
    C_OUT, BOTTLENECK, KSIZE = 8, 16, 9   # conv kernel sizes -> [9, 4, 2]

    x = jax.random.normal(kx, (N, C_IN, L), jnp.float32)   # PyTorch NCL input
    params = init_params(kparam, C_IN, C_OUT, BOTTLENECK, KSIZE, residual=True)
    kparams = prepare_params(params)      # one-time weight layout/pad/bf16 prep

    fwd = jax.jit(lambda xx: inception_block_forward(xx, kparams))
    out = jax.block_until_ready(fwd(x))

    ref = ref_forward(x, params)
    assert out.shape == (N, C_OUT, L), out.shape
    # bf16 MXU operands (f32 accumulation) vs the HIGHEST-precision reference:
    # rounding error is O(1e-2) worst case at these magnitudes.
    max_err = float(jnp.max(jnp.abs(out - ref)))
    assert max_err < 3e-2, f"max abs error {max_err}"

    print("KERNEL_OK")
</pallas_src>

<mosaic_0001>
module attributes {stable_mosaic.version = 11 : i64} {
  func.func @kernel(%arg0: i32, %arg1: memref<2x16x128xbf16, #tpu.memory_space<vmem>>, %arg2: memref<1x128x128xbf16, #tpu.memory_space<vmem>>, %arg3: memref<9x128x128xbf16, #tpu.memory_space<vmem>>, %arg4: memref<4x128x128xbf16, #tpu.memory_space<vmem>>, %arg5: memref<2x128x128xbf16, #tpu.memory_space<vmem>>, %arg6: memref<1x128x128xbf16, #tpu.memory_space<vmem>>, %arg7: memref<1x128xf32, #tpu.memory_space<vmem>>, %arg8: memref<1x128xf32, #tpu.memory_space<vmem>>, %arg9: memref<2x16x128xf32, #tpu.memory_space<vmem>>, %arg10: memref<64x128xbf16, #tpu.memory_space<vmem>>, %arg11: memref<64x128xbf16, #tpu.memory_space<vmem>>) attributes {dimension_semantics = [#tpu.dimension_semantics<parallel>], iteration_bounds = array<i64: 1>, scalar_prefetch = 0 : i64, scratch_operands = 2 : i64, tpu.core_type = #tpu.core_type<tc>, window_params = [{transform_indices = @transform_0, window_bounds = array<i64: 2, 16, 128>}, {pipeline_mode = #tpu.pipeline_mode<synchronous>, transform_indices = @transform_1, window_bounds = array<i64: 1, 128, 128>}, {pipeline_mode = #tpu.pipeline_mode<synchronous>, transform_indices = @transform_2, window_bounds = array<i64: 9, 128, 128>}, {pipeline_mode = #tpu.pipeline_mode<synchronous>, transform_indices = @transform_3, window_bounds = array<i64: 4, 128, 128>}, {pipeline_mode = #tpu.pipeline_mode<synchronous>, transform_indices = @transform_4, window_bounds = array<i64: 2, 128, 128>}, {pipeline_mode = #tpu.pipeline_mode<synchronous>, transform_indices = @transform_5, window_bounds = array<i64: 1, 128, 128>}, {pipeline_mode = #tpu.pipeline_mode<synchronous>, transform_indices = @transform_6, window_bounds = array<i64: 1, 128>}, {pipeline_mode = #tpu.pipeline_mode<synchronous>, transform_indices = @transform_7, window_bounds = array<i64: 1, 128>}, {transform_indices = @transform_8, window_bounds = array<i64: 2, 16, 128>}]} {
    %c0 = arith.constant 0 : index
    %c0_0 = arith.constant 0 : index
    %c0_1 = arith.constant 0 : index
    %0 = vector.load %arg1[%c0, %c0_0, %c0_1] : memref<2x16x128xbf16, #tpu.memory_space<vmem>>, vector<1x16x128xbf16>
    %1 = vector.shape_cast %0 : vector<1x16x128xbf16> to vector<16x128xbf16>
    %c8 = arith.constant 8 : index
    %c0_2 = arith.constant 0 : index
    %2 = vector.load %arg10[%c8, %c0_2] : memref<64x128xbf16, #tpu.memory_space<vmem>>, vector<16x128xbf16>
    tpu.vector_store %arg10[%c8, %c0_2], %1 {strides = array<i32>} : memref<64x128xbf16, #tpu.memory_space<vmem>>, vector<16x128xbf16>,
    %c1 = arith.constant 1 : index
    %c0_3 = arith.constant 0 : index
    %c0_4 = arith.constant 0 : index
    %3 = vector.load %arg1[%c1, %c0_3, %c0_4] : memref<2x16x128xbf16, #tpu.memory_space<vmem>>, vector<1x16x128xbf16>
    %4 = vector.shape_cast %3 : vector<1x16x128xbf16> to vector<16x128xbf16>
    %c32 = arith.constant 32 : index
    %c0_5 = arith.constant 0 : index
    %5 = vector.load %arg10[%c32, %c0_5] : memref<64x128xbf16, #tpu.memory_space<vmem>>, vector<16x128xbf16>
    tpu.vector_store %arg10[%c32, %c0_5], %4 {strides = array<i32>} : memref<64x128xbf16, #tpu.memory_space<vmem>>, vector<16x128xbf16>,
    %cst = arith.constant 0.000000e+00 : bf16
    %6 = vector.broadcast %cst : bf16 to vector<4x128xbf16>
    %cst_6 = arith.constant 0.000000e+00 : bf16
    %7 = vector.broadcast %cst_6 : bf16 to vector<4x128xbf16>
    %c4 = arith.constant 4 : index
    %c0_7 = arith.constant 0 : index
    %8 = vector.load %arg10[%c4, %c0_7] : memref<64x128xbf16, #tpu.memory_space<vmem>>, vector<4x128xbf16>
    tpu.vector_store %arg10[%c4, %c0_7], %6 {strides = array<i32>} : memref<64x128xbf16, #tpu.memory_space<vmem>>, vector<4x128xbf16>,
    %c24 = arith.constant 24 : index
    %c0_8 = arith.constant 0 : index
    %9 = vector.load %arg10[%c24, %c0_8] : memref<64x128xbf16, #tpu.memory_space<vmem>>, vector<4x128xbf16>
    tpu.vector_store %arg10[%c24, %c0_8], %7 {strides = array<i32>} : memref<64x128xbf16, #tpu.memory_space<vmem>>, vector<4x128xbf16>,
    %c28 = arith.constant 28 : index
    %c0_9 = arith.constant 0 : index
    %10 = vector.load %arg10[%c28, %c0_9] : memref<64x128xbf16, #tpu.memory_space<vmem>>, vector<4x128xbf16>
    tpu.vector_store %arg10[%c28, %c0_9], %6 {strides = array<i32>} : memref<64x128xbf16, #tpu.memory_space<vmem>>, vector<4x128xbf16>,
    %c48 = arith.constant 48 : index
    %c0_10 = arith.constant 0 : index
    %11 = vector.load %arg10[%c48, %c0_10] : memref<64x128xbf16, #tpu.memory_space<vmem>>, vector<4x128xbf16>
    tpu.vector_store %arg10[%c48, %c0_10], %7 {strides = array<i32>} : memref<64x128xbf16, #tpu.memory_space<vmem>>, vector<4x128xbf16>,
    %c4_11 = arith.constant 4 : index
    %c0_12 = arith.constant 0 : index
    %12 = vector.load %arg10[%c4_11, %c0_12] : memref<64x128xbf16, #tpu.memory_space<vmem>>, vector<48x128xbf16>
    %c0_13 = arith.constant 0 : index
    %c0_14 = arith.constant 0 : index
    %c0_15 = arith.constant 0 : index
    %13 = vector.load %arg2[%c0_13, %c0_14, %c0_15] : memref<1x128x128xbf16, #tpu.memory_space<vmem>>, vector<1x128x128xbf16>
    %14 = vector.shape_cast %13 : vector<1x128x128xbf16> to vector<128x128xbf16>
    %cst_16 = arith.constant dense<0.000000e+00> : vector<48x128xf32>
    %15 = tpu.matmul %12, %14, %cst_16 {dimension_numbers = #tpu.dot_dimension_numbers<[1], [0], [0], [1], [0, 0, 1, 1], [], []>} : vector<48x128xbf16>, vector<128x128xbf16>, vector<48x128xf32> -> vector<48x128xf32>
    %16 = arith.truncf %15 : vector<48x128xf32> to vector<48x128xbf16>
    %c4_17 = arith.constant 4 : index
    %c0_18 = arith.constant 0 : index
    %17 = vector.load %arg11[%c4_17, %c0_18] : memref<64x128xbf16, #tpu.memory_space<vmem>>, vector<48x128xbf16>
    tpu.vector_store %arg11[%c4_17, %c0_18], %16 {strides = array<i32>} : memref<64x128xbf16, #tpu.memory_space<vmem>>, vector<48x128xbf16>,
    %c0_19 = arith.constant 0 : index
    %c0_20 = arith.constant 0 : index
    %18 = vector.load %arg11[%c0_19, %c0_20] : memref<64x128xbf16, #tpu.memory_space<vmem>>, vector<48x128xbf16>
    %c0_21 = arith.constant 0 : index
    %c0_22 = arith.constant 0 : index
    %c0_23 = arith.constant 0 : index
    %19 = vector.load %arg3[%c0_21, %c0_22, %c0_23] : memref<9x128x128xbf16, #tpu.memory_space<vmem>>, vector<1x128x128xbf16>
    %20 = vector.shape_cast %19 : vector<1x128x128xbf16> to vector<128x128xbf16>
    %cst_24 = arith.constant dense<0.000000e+00> : vector<48x128xf32>
    %21 = tpu.matmul %18, %20, %cst_24 {dimension_numbers = #tpu.dot_dimension_numbers<[1], [0], [0], [1], [0, 0, 1, 1], [], []>} : vector<48x128xbf16>, vector<128x128xbf16>, vector<48x128xf32> -> vector<48x128xf32>
    %c1_25 = arith.constant 1 : index
    %c0_26 = arith.constant 0 : index
    %22 = vector.load %arg11[%c1_25, %c0_26] : memref<64x128xbf16, #tpu.memory_space<vmem>>, vector<48x128xbf16>
    %c1_27 = arith.constant 1 : index
    %c0_28 = arith.constant 0 : index
    %c0_29 = arith.constant 0 : index
    %23 = vector.load %arg3[%c1_27, %c0_28, %c0_29] : memref<9x128x128xbf16, #tpu.memory_space<vmem>>, vector<1x128x128xbf16>
    %24 = vector.shape_cast %23 : vector<1x128x128xbf16> to vector<128x128xbf16>
    %cst_30 = arith.constant dense<0.000000e+00> : vector<48x128xf32>
    %25 = tpu.matmul %22, %24, %cst_30 {dimension_numbers = #tpu.dot_dimension_numbers<[1], [0], [0], [1], [0, 0, 1, 1], [], []>} : vector<48x128xbf16>, vector<128x128xbf16>, vector<48x128xf32> -> vector<48x128xf32>
    %26 = arith.addf %21, %25 : vector<48x128xf32>
    %c2 = arith.constant 2 : index
    %c0_31 = arith.constant 0 : index
    %27 = vector.load %arg11[%c2, %c0_31] : memref<64x128xbf16, #tpu.memory_space<vmem>>, vector<48x128xbf16>
    %c2_32 = arith.constant 2 : index
    %c0_33 = arith.constant 0 : index
    %c0_34 = arith.constant 0 : index
    %28 = vector.load %arg3[%c2_32, %c0_33, %c0_34] : memref<9x128x128xbf16, #tpu.memory_space<vmem>>, vector<1x128x128xbf16>
    %29 = vector.shape_cast %28 : vector<1x128x128xbf16> to vector<128x128xbf16>
    %cst_35 = arith.constant dense<0.000000e+00> : vector<48x128xf32>
    %30 = tpu.matmul %27, %29, %cst_35 {dimension_numbers = #tpu.dot_dimension_numbers<[1], [0], [0], [1], [0, 0, 1, 1], [], []>} : vector<48x128xbf16>, vector<128x128xbf16>, vector<48x128xf32> -> vector<48x128xf32>
    %31 = arith.addf %26, %30 : vector<48x128xf32>
    %c3 = arith.constant 3 : index
    %c0_36 = arith.constant 0 : index
    %32 = vector.load %arg11[%c3, %c0_36] : memref<64x128xbf16, #tpu.memory_space<vmem>>, vector<48x128xbf16>
    %c3_37 = arith.constant 3 : index
    %c0_38 = arith.constant 0 : index
    %c0_39 = arith.constant 0 : index
    %33 = vector.load %arg3[%c3_37, %c0_38, %c0_39] : memref<9x128x128xbf16, #tpu.memory_space<vmem>>, vector<1x128x128xbf16>
    %34 = vector.shape_cast %33 : vector<1x128x128xbf16> to vector<128x128xbf16>
    %cst_40 = arith.constant dense<0.000000e+00> : vector<48x128xf32>
    %35 = tpu.matmul %32, %34, %cst_40 {dimension_numbers = #tpu.dot_dimension_numbers<[1], [0], [0], [1], [0, 0, 1, 1], [], []>} : vector<48x128xbf16>, vector<128x128xbf16>, vector<48x128xf32> -> vector<48x128xf32>
    %36 = arith.addf %31, %35 : vector<48x128xf32>
    %c4_41 = arith.constant 4 : index
    %c0_42 = arith.constant 0 : index
    %37 = vector.load %arg11[%c4_41, %c0_42] : memref<64x128xbf16, #tpu.memory_space<vmem>>, vector<48x128xbf16>
    %c4_43 = arith.constant 4 : index
    %c0_44 = arith.constant 0 : index
    %c0_45 = arith.constant 0 : index
    %38 = vector.load %arg3[%c4_43, %c0_44, %c0_45] : memref<9x128x128xbf16, #tpu.memory_space<vmem>>, vector<1x128x128xbf16>
    %39 = vector.shape_cast %38 : vector<1x128x128xbf16> to vector<128x128xbf16>
    %cst_46 = arith.constant dense<0.000000e+00> : vector<48x128xf32>
    %40 = tpu.matmul %37, %39, %cst_46 {dimension_numbers = #tpu.dot_dimension_numbers<[1], [0], [0], [1], [0, 0, 1, 1], [], []>} : vector<48x128xbf16>, vector<128x128xbf16>, vector<48x128xf32> -> vector<48x128xf32>
    %41 = arith.addf %36, %40 : vector<48x128xf32>
    %c5 = arith.constant 5 : index
    %c0_47 = arith.constant 0 : index
    %42 = vector.load %arg11[%c5, %c0_47] : memref<64x128xbf16, #tpu.memory_space<vmem>>, vector<48x128xbf16>
    %c5_48 = arith.constant 5 : index
    %c0_49 = arith.constant 0 : index
    %c0_50 = arith.constant 0 : index
    %43 = vector.load %arg3[%c5_48, %c0_49, %c0_50] : memref<9x128x128xbf16, #tpu.memory_space<vmem>>, vector<1x128x128xbf16>
    %44 = vector.shape_cast %43 : vector<1x128x128xbf16> to vector<128x128xbf16>
    %cst_51 = arith.constant dense<0.000000e+00> : vector<48x128xf32>
    %45 = tpu.matmul %42, %44, %cst_51 {dimension_numbers = #tpu.dot_dimension_numbers<[1], [0], [0], [1], [0, 0, 1, 1], [], []>} : vector<48x128xbf16>, vector<128x128xbf16>, vector<48x128xf32> -> vector<48x128xf32>
    %46 = arith.addf %41, %45 : vector<48x128xf32>
    %c6 = arith.constant 6 : index
    %c0_52 = arith.constant 0 : index
    %47 = vector.load %arg11[%c6, %c0_52] : memref<64x128xbf16, #tpu.memory_space<vmem>>, vector<48x128xbf16>
    %c6_53 = arith.constant 6 : index
    %c0_54 = arith.constant 0 : index
    %c0_55 = arith.constant 0 : index
    %48 = vector.load %arg3[%c6_53, %c0_54, %c0_55] : memref<9x128x128xbf16, #tpu.memory_space<vmem>>, vector<1x128x128xbf16>
    %49 = vector.shape_cast %48 : vector<1x128x128xbf16> to vector<128x128xbf16>
    %cst_56 = arith.constant dense<0.000000e+00> : vector<48x128xf32>
    %50 = tpu.matmul %47, %49, %cst_56 {dimension_numbers = #tpu.dot_dimension_numbers<[1], [0], [0], [1], [0, 0, 1, 1], [], []>} : vector<48x128xbf16>, vector<128x128xbf16>, vector<48x128xf32> -> vector<48x128xf32>
    %51 = arith.addf %46, %50 : vector<48x128xf32>
    %c7 = arith.constant 7 : index
    %c0_57 = arith.constant 0 : index
    %52 = vector.load %arg11[%c7, %c0_57] : memref<64x128xbf16, #tpu.memory_space<vmem>>, vector<48x128xbf16>
    %c7_58 = arith.constant 7 : index
    %c0_59 = arith.constant 0 : index
    %c0_60 = arith.constant 0 : index
    %53 = vector.load %arg3[%c7_58, %c0_59, %c0_60] : memref<9x128x128xbf16, #tpu.memory_space<vmem>>, vector<1x128x128xbf16>
    %54 = vector.shape_cast %53 : vector<1x128x128xbf16> to vector<128x128xbf16>
    %cst_61 = arith.constant dense<0.000000e+00> : vector<48x128xf32>
    %55 = tpu.matmul %52, %54, %cst_61 {dimension_numbers = #tpu.dot_dimension_numbers<[1], [0], [0], [1], [0, 0, 1, 1], [], []>} : vector<48x128xbf16>, vector<128x128xbf16>, vector<48x128xf32> -> vector<48x128xf32>
    %56 = arith.addf %51, %55 : vector<48x128xf32>
    %c8_62 = arith.constant 8 : index
    %c0_63 = arith.constant 0 : index
    %57 = vector.load %arg11[%c8_62, %c0_63] : memref<64x128xbf16, #tpu.memory_space<vmem>>, vector<48x128xbf16>
    %c8_64 = arith.constant 8 : index
    %c0_65 = arith.constant 0 : index
    %c0_66 = arith.constant 0 : index
    %58 = vector.load %arg3[%c8_64, %c0_65, %c0_66] : memref<9x128x128xbf16, #tpu.memory_space<vmem>>, vector<1x128x128xbf16>
    %59 = vector.shape_cast %58 : vector<1x128x128xbf16> to vector<128x128xbf16>
    %cst_67 = arith.constant dense<0.000000e+00> : vector<48x128xf32>
    %60 = tpu.matmul %57, %59, %cst_67 {dimension_numbers = #tpu.dot_dimension_numbers<[1], [0], [0], [1], [0, 0, 1, 1], [], []>} : vector<48x128xbf16>, vector<128x128xbf16>, vector<48x128xf32> -> vector<48x128xf32>
    %61 = arith.addf %56, %60 : vector<48x128xf32>
    %62 = arith.truncf %61 : vector<48x128xf32> to vector<48x128xbf16>
    %c4_68 = arith.constant 4 : index
    %c0_69 = arith.constant 0 : index
    %63 = vector.load %arg10[%c4_68, %c0_69] : memref<64x128xbf16, #tpu.memory_space<vmem>>, vector<48x128xbf16>
    tpu.vector_store %arg10[%c4_68, %c0_69], %62 {strides = array<i32>} : memref<64x128xbf16, #tpu.memory_space<vmem>>, vector<48x128xbf16>,
    %cst_70 = arith.constant 0.000000e+00 : bf16
    %64 = vector.broadcast %cst_70 : bf16 to vector<4x128xbf16>
    %cst_71 = arith.constant 0.000000e+00 : bf16
    %65 = vector.broadcast %cst_71 : bf16 to vector<4x128xbf16>
    %c4_72 = arith.constant 4 : index
    %c0_73 = arith.constant 0 : index
    %66 = vector.load %arg10[%c4_72, %c0_73] : memref<64x128xbf16, #tpu.memory_space<vmem>>, vector<4x128xbf16>
    tpu.vector_store %arg10[%c4_72, %c0_73], %64 {strides = array<i32>} : memref<64x128xbf16, #tpu.memory_space<vmem>>, vector<4x128xbf16>,
    %c24_74 = arith.constant 24 : index
    %c0_75 = arith.constant 0 : index
    %67 = vector.load %arg10[%c24_74, %c0_75] : memref<64x128xbf16, #tpu.memory_space<vmem>>, vector<4x128xbf16>
    tpu.vector_store %arg10[%c24_74, %c0_75], %65 {strides = array<i32>} : memref<64x128xbf16, #tpu.memory_space<vmem>>, vector<4x128xbf16>,
    %c28_76 = arith.constant 28 : index
    %c0_77 = arith.constant 0 : index
    %68 = vector.load %arg10[%c28_76, %c0_77] : memref<64x128xbf16, #tpu.memory_space<vmem>>, vector<4x128xbf16>
    tpu.vector_store %arg10[%c28_76, %c0_77], %64 {strides = array<i32>} : memref<64x128xbf16, #tpu.memory_space<vmem>>, vector<4x128xbf16>,
    %c48_78 = arith.constant 48 : index
    %c0_79 = arith.constant 0 : index
    %69 = vector.load %arg10[%c48_78, %c0_79] : memref<64x128xbf16, #tpu.memory_space<vmem>>, vector<4x128xbf16>
    tpu.vector_store %arg10[%c48_78, %c0_79], %65 {strides = array<i32>} : memref<64x128xbf16, #tpu.memory_space<vmem>>, vector<4x128xbf16>,
    %c3_80 = arith.constant 3 : index
    %c0_81 = arith.constant 0 : index
    %70 = vector.load %arg10[%c3_80, %c0_81] : memref<64x128xbf16, #tpu.memory_space<vmem>>, vector<48x128xbf16>
    %c0_82 = arith.constant 0 : index
    %c0_83 = arith.constant 0 : index
    %c0_84 = arith.constant 0 : index
    %71 = vector.load %arg4[%c0_82, %c0_83, %c0_84] : memref<4x128x128xbf16, #tpu.memory_space<vmem>>, vector<1x128x128xbf16>
    %72 = vector.shape_cast %71 : vector<1x128x128xbf16> to vector<128x128xbf16>
    %cst_85 = arith.constant dense<0.000000e+00> : vector<48x128xf32>
    %73 = tpu.matmul %70, %72, %cst_85 {dimension_numbers = #tpu.dot_dimension_numbers<[1], [0], [0], [1], [0, 0, 1, 1], [], []>} : vector<48x128xbf16>, vector<128x128xbf16>, vector<48x128xf32> -> vector<48x128xf32>
    %c4_86 = arith.constant 4 : index
    %c0_87 = arith.constant 0 : index
    %74 = vector.load %arg10[%c4_86, %c0_87] : memref<64x128xbf16, #tpu.memory_space<vmem>>, vector<48x128xbf16>
    %c1_88 = arith.constant 1 : index
    %c0_89 = arith.constant 0 : index
    %c0_90 = arith.constant 0 : index
    %75 = vector.load %arg4[%c1_88, %c0_89, %c0_90] : memref<4x128x128xbf16, #tpu.memory_space<vmem>>, vector<1x128x128xbf16>
    %76 = vector.shape_cast %75 : vector<1x128x128xbf16> to vector<128x128xbf16>
    %cst_91 = arith.constant dense<0.000000e+00> : vector<48x128xf32>
    %77 = tpu.matmul %74, %76, %cst_91 {dimension_numbers = #tpu.dot_dimension_numbers<[1], [0], [0], [1], [0, 0, 1, 1], [], []>} : vector<48x128xbf16>, vector<128x128xbf16>, vector<48x128xf32> -> vector<48x128xf32>
    %78 = arith.addf %73, %77 : vector<48x128xf32>
    %c5_92 = arith.constant 5 : index
    %c0_93 = arith.constant 0 : index
    %79 = vector.load %arg10[%c5_92, %c0_93] : memref<64x128xbf16, #tpu.memory_space<vmem>>, vector<48x128xbf16>
    %c2_94 = arith.constant 2 : index
    %c0_95 = arith.constant 0 : index
    %c0_96 = arith.constant 0 : index
    %80 = vector.load %arg4[%c2_94, %c0_95, %c0_96] : memref<4x128x128xbf16, #tpu.memory_space<vmem>>, vector<1x128x128xbf16>
    %81 = vector.shape_cast %80 : vector<1x128x128xbf16> to vector<128x128xbf16>
    %cst_97 = arith.constant dense<0.000000e+00> : vector<48x128xf32>
    %82 = tpu.matmul %79, %81, %cst_97 {dimension_numbers = #tpu.dot_dimension_numbers<[1], [0], [0], [1], [0, 0, 1, 1], [], []>} : vector<48x128xbf16>, vector<128x128xbf16>, vector<48x128xf32> -> vector<48x128xf32>
    %83 = arith.addf %78, %82 : vector<48x128xf32>
    %c6_98 = arith.constant 6 : index
    %c0_99 = arith.constant 0 : index
    %84 = vector.load %arg10[%c6_98, %c0_99] : memref<64x128xbf16, #tpu.memory_space<vmem>>, vector<48x128xbf16>
    %c3_100 = arith.constant 3 : index
    %c0_101 = arith.constant 0 : index
    %c0_102 = arith.constant 0 : index
    %85 = vector.load %arg4[%c3_100, %c0_101, %c0_102] : memref<4x128x128xbf16, #tpu.memory_space<vmem>>, vector<1x128x128xbf16>
    %86 = vector.shape_cast %85 : vector<1x128x128xbf16> to vector<128x128xbf16>
    %cst_103 = arith.constant dense<0.000000e+00> : vector<48x128xf32>
    %87 = tpu.matmul %84, %86, %cst_103 {dimension_numbers = #tpu.dot_dimension_numbers<[1], [0], [0], [1], [0, 0, 1, 1], [], []>} : vector<48x128xbf16>, vector<128x128xbf16>, vector<48x128xf32> -> vector<48x128xf32>
    %88 = arith.addf %83, %87 : vector<48x128xf32>
    %89 = arith.truncf %88 : vector<48x128xf32> to vector<48x128xbf16>
    %c4_104 = arith.constant 4 : index
    %c0_105 = arith.constant 0 : index
    %90 = vector.load %arg11[%c4_104, %c0_105] : memref<64x128xbf16, #tpu.memory_space<vmem>>, vector<48x128xbf16>
    tpu.vector_store %arg11[%c4_104, %c0_105], %89 {strides = array<i32>} : memref<64x128xbf16, #tpu.memory_space<vmem>>, vector<48x128xbf16>,
    %cst_106 = arith.constant 0.000000e+00 : bf16
    %91 = vector.broadcast %cst_106 : bf16 to vector<4x128xbf16>
    %cst_107 = arith.constant 0.000000e+00 : bf16
    %92 = vector.broadcast %cst_107 : bf16 to vector<4x128xbf16>
    %c4_108 = arith.constant 4 : index
    %c0_109 = arith.constant 0 : index
    %93 = vector.load %arg11[%c4_108, %c0_109] : memref<64x128xbf16, #tpu.memory_space<vmem>>, vector<4x128xbf16>
    tpu.vector_store %arg11[%c4_108, %c0_109], %91 {strides = array<i32>} : memref<64x128xbf16, #tpu.memory_space<vmem>>, vector<4x128xbf16>,
    %c24_110 = arith.constant 24 : index
    %c0_111 = arith.constant 0 : index
    %94 = vector.load %arg11[%c24_110, %c0_111] : memref<64x128xbf16, #tpu.memory_space<vmem>>, vector<4x128xbf16>
    tpu.vector_store %arg11[%c24_110, %c0_111], %92 {strides = array<i32>} : memref<64x128xbf16, #tpu.memory_space<vmem>>, vector<4x128xbf16>,
    %c28_112 = arith.constant 28 : index
    %c0_113 = arith.constant 0 : index
    %95 = vector.load %arg11[%c28_112, %c0_113] : memref<64x128xbf16, #tpu.memory_space<vmem>>, vector<4x128xbf16>
    tpu.vector_store %arg11[%c28_112, %c0_113], %91 {strides = array<i32>} : memref<64x128xbf16, #tpu.memory_space<vmem>>, vector<4x128xbf16>,
    %c48_114 = arith.constant 48 : index
    %c0_115 = arith.constant 0 : index
    %96 = vector.load %arg11[%c48_114, %c0_115] : memref<64x128xbf16, #tpu.memory_space<vmem>>, vector<4x128xbf16>
    tpu.vector_store %arg11[%c48_114, %c0_115], %92 {strides = array<i32>} : memref<64x128xbf16, #tpu.memory_space<vmem>>, vector<4x128xbf16>,
    %c8_116 = arith.constant 8 : index
    %c0_117 = arith.constant 0 : index
    %97 = vector.load %arg11[%c8_116, %c0_117] : memref<64x128xbf16, #tpu.memory_space<vmem>>, vector<16x128xbf16>
    %c0_118 = arith.constant 0 : index
    %c0_119 = arith.constant 0 : index
    %c0_120 = arith.constant 0 : index
    %98 = vector.load %arg5[%c0_118, %c0_119, %c0_120] : memref<2x128x128xbf16, #tpu.memory_space<vmem>>, vector<1x128x128xbf16>
    %99 = vector.shape_cast %98 : vector<1x128x128xbf16> to vector<128x128xbf16>
    %cst_121 = arith.constant dense<0.000000e+00> : vector<16x128xf32>
    %100 = tpu.matmul %97, %99, %cst_121 {dimension_numbers = #tpu.dot_dimension_numbers<[1], [0], [0], [1], [0, 0, 1, 1], [], []>} : vector<16x128xbf16>, vector<128x128xbf16>, vector<16x128xf32> -> vector<16x128xf32>
    %c9 = arith.constant 9 : index
    %c0_122 = arith.constant 0 : index
    %101 = vector.load %arg11[%c9, %c0_122] : memref<64x128xbf16, #tpu.memory_space<vmem>>, vector<16x128xbf16>
    %c1_123 = arith.constant 1 : index
    %c0_124 = arith.constant 0 : index
    %c0_125 = arith.constant 0 : index
    %102 = vector.load %arg5[%c1_123, %c0_124, %c0_125] : memref<2x128x128xbf16, #tpu.memory_space<vmem>>, vector<1x128x128xbf16>
    %103 = vector.shape_cast %102 : vector<1x128x128xbf16> to vector<128x128xbf16>
    %cst_126 = arith.constant dense<0.000000e+00> : vector<16x128xf32>
    %104 = tpu.matmul %101, %103, %cst_126 {dimension_numbers = #tpu.dot_dimension_numbers<[1], [0], [0], [1], [0, 0, 1, 1], [], []>} : vector<16x128xbf16>, vector<128x128xbf16>, vector<16x128xf32> -> vector<16x128xf32>
    %105 = arith.addf %100, %104 : vector<16x128xf32>
    %c0_127 = arith.constant 0 : index
    %c0_128 = arith.constant 0 : index
    %c0_129 = arith.constant 0 : index
    %106 = vector.load %arg1[%c0_127, %c0_128, %c0_129] : memref<2x16x128xbf16, #tpu.memory_space<vmem>>, vector<1x16x128xbf16>
    %107 = vector.shape_cast %106 : vector<1x16x128xbf16> to vector<16x128xbf16>
    %c0_130 = arith.constant 0 : index
    %c0_131 = arith.constant 0 : index
    %c0_132 = arith.constant 0 : index
    %108 = vector.load %arg6[%c0_130, %c0_131, %c0_132] : memref<1x128x128xbf16, #tpu.memory_space<vmem>>, vector<1x128x128xbf16>
    %109 = vector.shape_cast %108 : vector<1x128x128xbf16> to vector<128x128xbf16>
    %cst_133 = arith.constant dense<0.000000e+00> : vector<16x128xf32>
    %110 = tpu.matmul %107, %109, %cst_133 {dimension_numbers = #tpu.dot_dimension_numbers<[1], [0], [0], [1], [0, 0, 1, 1], [], []>} : vector<16x128xbf16>, vector<128x128xbf16>, vector<16x128xf32> -> vector<16x128xf32>
    %c0_134 = arith.constant 0 : index
    %c0_135 = arith.constant 0 : index
    %111 = vector.load %arg7[%c0_134, %c0_135] : memref<1x128xf32, #tpu.memory_space<vmem>>, vector<1x128xf32>
    %112 = vector.broadcast %111 : vector<1x128xf32> to vector<16x128xf32>
    %113 = arith.mulf %110, %112 : vector<16x128xf32>
    %c0_136 = arith.constant 0 : index
    %c0_137 = arith.constant 0 : index
    %114 = vector.load %arg8[%c0_136, %c0_137] : memref<1x128xf32, #tpu.memory_space<vmem>>, vector<1x128xf32>
    %115 = vector.broadcast %114 : vector<1x128xf32> to vector<16x128xf32>
    %116 = arith.addf %113, %115 : vector<16x128xf32>
    %cst_138 = arith.constant 0.000000e+00 : f32
    %117 = vector.broadcast %cst_138 : f32 to vector<16x128xf32>
    %118 = arith.maximumf %116, %117 : vector<16x128xf32>
    %119 = arith.addf %105, %118 : vector<16x128xf32>
    %c0_139 = arith.constant 0 : index
    %c0_140 = arith.constant 0 : index
    %c0_141 = arith.constant 0 : index
    %120 = vector.load %arg9[%c0_139, %c0_140, %c0_141] : memref<2x16x128xf32, #tpu.memory_space<vmem>>, vector<1x16x128xf32>
    %121 = vector.shape_cast %120 : vector<1x16x128xf32> to vector<16x128xf32>
    %122 = vector.shape_cast %119 : vector<16x128xf32> to vector<1x16x128xf32>
    tpu.vector_store %arg9[%c0_139, %c0_140, %c0_141], %122 {strides = array<i32>} : memref<2x16x128xf32, #tpu.memory_space<vmem>>, vector<1x16x128xf32>,
    %c32_142 = arith.constant 32 : index
    %c0_143 = arith.constant 0 : index
    %123 = vector.load %arg11[%c32_142, %c0_143] : memref<64x128xbf16, #tpu.memory_space<vmem>>, vector<16x128xbf16>
    %c0_144 = arith.constant 0 : index
    %c0_145 = arith.constant 0 : index
    %c0_146 = arith.constant 0 : index
    %124 = vector.load %arg5[%c0_144, %c0_145, %c0_146] : memref<2x128x128xbf16, #tpu.memory_space<vmem>>, vector<1x128x128xbf16>
    %125 = vector.shape_cast %124 : vector<1x128x128xbf16> to vector<128x128xbf16>
    %cst_147 = arith.constant dense<0.000000e+00> : vector<16x128xf32>
    %126 = tpu.matmul %123, %125, %cst_147 {dimension_numbers = #tpu.dot_dimension_numbers<[1], [0], [0], [1], [0, 0, 1, 1], [], []>} : vector<16x128xbf16>, vector<128x128xbf16>, vector<16x128xf32> -> vector<16x128xf32>
    %c33 = arith.constant 33 : index
    %c0_148 = arith.constant 0 : index
    %127 = vector.load %arg11[%c33, %c0_148] : memref<64x128xbf16, #tpu.memory_space<vmem>>, vector<16x128xbf16>
    %c1_149 = arith.constant 1 : index
    %c0_150 = arith.constant 0 : index
    %c0_151 = arith.constant 0 : index
    %128 = vector.load %arg5[%c1_149, %c0_150, %c0_151] : memref<2x128x128xbf16, #tpu.memory_space<vmem>>, vector<1x128x128xbf16>
    %129 = vector.shape_cast %128 : vector<1x128x128xbf16> to vector<128x128xbf16>
    %cst_152 = arith.constant dense<0.000000e+00> : vector<16x128xf32>
    %130 = tpu.matmul %127, %129, %cst_152 {dimension_numbers = #tpu.dot_dimension_numbers<[1], [0], [0], [1], [0, 0, 1, 1], [], []>} : vector<16x128xbf16>, vector<128x128xbf16>, vector<16x128xf32> -> vector<16x128xf32>
    %131 = arith.addf %126, %130 : vector<16x128xf32>
    %c1_153 = arith.constant 1 : index
    %c0_154 = arith.constant 0 : index
    %c0_155 = arith.constant 0 : index
    %132 = vector.load %arg1[%c1_153, %c0_154, %c0_155] : memref<2x16x128xbf16, #tpu.memory_space<vmem>>, vector<1x16x128xbf16>
    %133 = vector.shape_cast %132 : vector<1x16x128xbf16> to vector<16x128xbf16>
    %c0_156 = arith.constant 0 : index
    %c0_157 = arith.constant 0 : index
    %c0_158 = arith.constant 0 : index
    %134 = vector.load %arg6[%c0_156, %c0_157, %c0_158] : memref<1x128x128xbf16, #tpu.memory_space<vmem>>, vector<1x128x128xbf16>
    %135 = vector.shape_cast %134 : vector<1x128x128xbf16> to vector<128x128xbf16>
    %cst_159 = arith.constant dense<0.000000e+00> : vector<16x128xf32>
    %136 = tpu.matmul %133, %135, %cst_159 {dimension_numbers = #tpu.dot_dimension_numbers<[1], [0], [0], [1], [0, 0, 1, 1], [], []>} : vector<16x128xbf16>, vector<128x128xbf16>, vector<16x128xf32> -> vector<16x128xf32>
    %c0_160 = arith.constant 0 : index
    %c0_161 = arith.constant 0 : index
    %137 = vector.load %arg7[%c0_160, %c0_161] : memref<1x128xf32, #tpu.memory_space<vmem>>, vector<1x128xf32>
    %138 = vector.broadcast %137 : vector<1x128xf32> to vector<16x128xf32>
    %139 = arith.mulf %136, %138 : vector<16x128xf32>
    %c0_162 = arith.constant 0 : index
    %c0_163 = arith.constant 0 : index
    %140 = vector.load %arg8[%c0_162, %c0_163] : memref<1x128xf32, #tpu.memory_space<vmem>>, vector<1x128xf32>
    %141 = vector.broadcast %140 : vector<1x128xf32> to vector<16x128xf32>
    %142 = arith.addf %139, %141 : vector<16x128xf32>
    %cst_164 = arith.constant 0.000000e+00 : f32
    %143 = vector.broadcast %cst_164 : f32 to vector<16x128xf32>
    %144 = arith.maximumf %142, %143 : vector<16x128xf32>
    %145 = arith.addf %131, %144 : vector<16x128xf32>
    %c1_165 = arith.constant 1 : index
    %c0_166 = arith.constant 0 : index
    %c0_167 = arith.constant 0 : index
    %146 = vector.load %arg9[%c1_165, %c0_166, %c0_167] : memref<2x16x128xf32, #tpu.memory_space<vmem>>, vector<1x16x128xf32>
    %147 = vector.shape_cast %146 : vector<1x16x128xf32> to vector<16x128xf32>
    %148 = vector.shape_cast %145 : vector<16x128xf32> to vector<1x16x128xf32>
    tpu.vector_store %arg9[%c1_165, %c0_166, %c0_167], %148 {strides = array<i32>} : memref<2x16x128xf32, #tpu.memory_space<vmem>>, vector<1x16x128xf32>,
    return
  }
  func.func @transform_0(%arg0: i32) -> (i32, i32, i32) {
    %c0_i32 = arith.constant 0 : i32
    %c0_i32_0 = arith.constant 0 : i32
    %c0_i32_1 = arith.constant 0 : i32
    return %arg0, %c0_i32, %c0_i32_0 : i32, i32, i32
  }
  func.func @transform_1(%arg0: i32) -> (i32, i32, i32) {
    %c0_i32 = arith.constant 0 : i32
    %c0_i32_0 = arith.constant 0 : i32
    %c0_i32_1 = arith.constant 0 : i32
    %c0_i32_2 = arith.constant 0 : i32
    return %c0_i32, %c0_i32_0, %c0_i32_1 : i32, i32, i32
  }
  func.func @transform_2(%arg0: i32) -> (i32, i32, i32) {
    %c0_i32 = arith.constant 0 : i32
    %c0_i32_0 = arith.constant 0 : i32
    %c0_i32_1 = arith.constant 0 : i32
    %c0_i32_2 = arith.constant 0 : i32
    return %c0_i32, %c0_i32_0, %c0_i32_1 : i32, i32, i32
  }
  func.func @transform_3(%arg0: i32) -> (i32, i32, i32) {
    %c0_i32 = arith.constant 0 : i32
    %c0_i32_0 = arith.constant 0 : i32
    %c0_i32_1 = arith.constant 0 : i32
    %c0_i32_2 = arith.constant 0 : i32
    return %c0_i32, %c0_i32_0, %c0_i32_1 : i32, i32, i32
  }
  func.func @transform_4(%arg0: i32) -> (i32, i32, i32) {
    %c0_i32 = arith.constant 0 : i32
    %c0_i32_0 = arith.constant 0 : i32
    %c0_i32_1 = arith.constant 0 : i32
    %c0_i32_2 = arith.constant 0 : i32
    return %c0_i32, %c0_i32_0, %c0_i32_1 : i32, i32, i32
  }
  func.func @transform_5(%arg0: i32) -> (i32, i32, i32) {
    %c0_i32 = arith.constant 0 : i32
    %c0_i32_0 = arith.constant 0 : i32
    %c0_i32_1 = arith.constant 0 : i32
    %c0_i32_2 = arith.constant 0 : i32
    return %c0_i32, %c0_i32_0, %c0_i32_1 : i32, i32, i32
  }
  func.func @transform_6(%arg0: i32) -> (i32, i32) {
    %c0_i32 = arith.constant 0 : i32
    %c0_i32_0 = arith.constant 0 : i32
    %c0_i32_1 = arith.constant 0 : i32
    return %c0_i32, %c0_i32_0 : i32, i32
  }
  func.func @transform_7(%arg0: i32) -> (i32, i32) {
    %c0_i32 = arith.constant 0 : i32
    %c0_i32_0 = arith.constant 0 : i32
    %c0_i32_1 = arith.constant 0 : i32
    return %c0_i32, %c0_i32_0 : i32, i32
  }
  func.func @transform_8(%arg0: i32) -> (i32, i32, i32) {
    %c0_i32 = arith.constant 0 : i32
    %c0_i32_0 = arith.constant 0 : i32
    %c0_i32_1 = arith.constant 0 : i32
    return %arg0, %c0_i32, %c0_i32_0 : i32, i32, i32
  }
}

</mosaic_0001>

<llo_original>
// kernel: _lambda_.1
$region0: #{_lambda_.1}
  #allocation0 [shape = 'u32[]', space=smem, size = 0x4, offset = 0x4, fixed_abs, tag = 'smem constant byte address 0x4 - core index']
  #allocation1 [shape = 'u32[72,128]{1,0:T(1,128)}', space=vmem, size = 0x9000, scoped, tag = 'internal scratch']
  #allocation2 [shape = 'bf16[64,128]{1,0:T(8,128)(2,1)}', space=vmem, size = 0x4000, scoped, tag = 'scratch operand']
  #allocation3 [shape = 'bf16[64,128]{1,0:T(8,128)(2,1)}', space=vmem, size = 0x4000, scoped, tag = 'scratch operand']
  %s0 = inlined_call_operand.vmem [shape: bf16[2,16,128], index: 0, kind: input, shape index: {}]
  %s1 = inlined_call_operand.hbm [shape: bf16[1,128,128], index: 1, kind: input, shape index: {}]
  %s2 = inlined_call_operand.hbm [shape: bf16[9,128,128], index: 2, kind: input, shape index: {}]
  %s3 = inlined_call_operand.hbm [shape: bf16[4,128,128], index: 3, kind: input, shape index: {}]
  %s4 = inlined_call_operand.hbm [shape: bf16[2,128,128], index: 4, kind: input, shape index: {}]
  %s5 = inlined_call_operand.vmem [shape: bf16[1,128,128], index: 5, kind: input, shape index: {}]
  %s6 = inlined_call_operand.vmem [shape: f32[1,128], index: 6, kind: input, shape index: {}]
  %s7 = inlined_call_operand.vmem [shape: f32[1,128], index: 7, kind: input, shape index: {}]
  %s8 = inlined_call_operand.vmem [shape: f32[2,16,128], index: 8, kind: output, shape index: {}]
  %s9 = sld [smem:[#allocation0]]
  $region58: #{_lambda_.1} parent=0
    _
  %s11 = ssub.s32 1, %s9
  %s12 = scalar_select 0, %s11, %s9
  $region1: #{_lambda_.1} parent=0
    #allocation4 [shape = 'u8[32768]{0}', space=vmem, size = 0x8000, scoped, tag = 'input window, operand 1, single buffered']
    #allocation5 [shape = 's32[1]{0}', space=sflag, size = 0x4, scoped, tag = 'scoped memory for _lambda_.1']
    #allocation6 [shape = 'u8[294912]{0}', space=vmem, size = 0x48000, scoped, tag = 'input window, operand 2, single buffered']
    #allocation7 [shape = 's32[1]{0}', space=sflag, size = 0x4, scoped, tag = 'scoped memory for _lambda_.1']
    #allocation8 [shape = 'u8[131072]{0}', space=vmem, size = 0x20000, scoped, tag = 'input window, operand 3, single buffered']
    #allocation9 [shape = 'u8[65536]{0}', space=vmem, size = 0x10000, scoped, tag = 'input window, operand 4, single buffered']
    #allocation10 [shape = 's32[1]{0}', space=sflag, size = 0x4, scoped, tag = 'scoped memory for _lambda_.1']
    %13 = vsyncpa [#allocation5], 0
    %14 = vsyncpa [#allocation7], 0
    %15 = vsyncpa [#allocation10], 0
    // Predicated region
    $region2: #{_lambda_.1} parent=1 // pred_check
      _
    $region3: #{_lambda_.1} parent=1 // pred_check_branch
      %17 = sbr.rel (0) target = $region5
    $region4: #{_lambda_.1} parent=1 // pred_region
      _
    $region5: #{_lambda_.1} parent=1 // pred_fallthru
      _
    // Predicated region
    $region6: #{_lambda_.1} parent=1 // pred_check
      _
    $region7: #{_lambda_.1} parent=1 // pred_check_branch
      %19 = sbr.rel (0) target = $region9
    $region8: #{_lambda_.1} parent=1 // pred_region
      %21 = vsyncadd [#allocation5], 0
      %s22 = sshll.u32 %s1, 4
      %s23 = int_to_ptr.hbm [resolvable:$true] %s22
      %s24 = sshll.u32 [#allocation4], 4
      %s25 = int_to_ptr.vmem [resolvable:$true] %s24
      %30 = dma.hbm_to_vmem [thread:$0]  %s23, 1024, %s25, [#allocation5], 64, 64, 4
    $region9: #{_lambda_.1} parent=1 // pred_fallthru
      _
    // Predicated region
    $region10: #{_lambda_.1} parent=1 // pred_check
      _
    $region11: #{_lambda_.1} parent=1 // pred_check_branch
      %32 = sbr.rel (0) target = $region13
    $region12: #{_lambda_.1} parent=1 // pred_region
      %34 = vsyncadd [#allocation7], 0
      %s35 = sshll.u32 %s2, 4
      %s36 = int_to_ptr.hbm [resolvable:$true] %s35
      %s37 = sshll.u32 [#allocation6], 4
      %s38 = int_to_ptr.vmem [resolvable:$true] %s37
      %43 = dma.hbm_to_vmem [thread:$0]  %s36, 9216, %s38, [#allocation7], 64, 64, 4
    $region13: #{_lambda_.1} parent=1 // pred_fallthru
      _
    // Predicated region
    $region14: #{_lambda_.1} parent=1 // pred_check
      _
    $region15: #{_lambda_.1} parent=1 // pred_check_branch
      %45 = sbr.rel (0) target = $region17
    $region16: #{_lambda_.1} parent=1 // pred_region
      %47 = vsyncadd [#allocation7], 0
      %s48 = sshll.u32 %s3, 4
      %s49 = int_to_ptr.hbm [resolvable:$true] %s48
      %s50 = sshll.u32 [#allocation8], 4
      %s51 = int_to_ptr.vmem [resolvable:$true] %s50
      %56 = dma.hbm_to_vmem [thread:$0]  %s49, 4096, %s51, [#allocation7], 64, 64, 4
    $region17: #{_lambda_.1} parent=1 // pred_fallthru
      _
    // Predicated region
    $region18: #{_lambda_.1} parent=1 // pred_check
      _
    $region19: #{_lambda_.1} parent=1 // pred_check_branch
      %58 = sbr.rel (0) target = $region21
    $region20: #{_lambda_.1} parent=1 // pred_region
      %60 = vsyncadd [#allocation10], 0
      %s61 = sshll.u32 %s4, 4
      %s62 = int_to_ptr.hbm [resolvable:$true] %s61
      %s63 = sshll.u32 [#allocation9], 4
      %s64 = int_to_ptr.vmem [resolvable:$true] %s63
      %69 = dma.hbm_to_vmem [thread:$0]  %s62, 2048, %s64, [#allocation10], 64, 64, 4
    $region21: #{_lambda_.1} parent=1 // pred_fallthru
      _
    // Predicated region
    $region22: #{_lambda_.1} parent=1 // pred_check
      _
    $region23: #{_lambda_.1} parent=1 // pred_check_branch
      %71 = sbr.rel (0) target = $region25
    $region24: #{_lambda_.1} parent=1 // pred_region
      _
    $region25: #{_lambda_.1} parent=1 // pred_fallthru
      _
    // Predicated region
    $region26: #{_lambda_.1} parent=1 // pred_check
      _
    $region27: #{_lambda_.1} parent=1 // pred_check_branch
      %73 = sbr.rel (0) target = $region29
    $region28: #{_lambda_.1} parent=1 // pred_region
      _
    $region29: #{_lambda_.1} parent=1 // pred_fallthru
      _
    // Predicated region
    $region30: #{_lambda_.1} parent=1 // pred_check
      _
    $region31: #{_lambda_.1} parent=1 // pred_check_branch
      %75 = sbr.rel (0) target = $region33
    $region32: #{_lambda_.1} parent=1 // pred_region
      _
    $region33: #{_lambda_.1} parent=1 // pred_fallthru
      _
    // Predicated region
    $region34: #{_lambda_.1} parent=1 // pred_check
      _
    $region35: #{_lambda_.1} parent=1 // pred_check_branch
      %77 = sbr.rel (0) target = $region37
    $region36: #{_lambda_.1} parent=1 // pred_region
      %79 = dma.done [#allocation5], 1024
    $region37: #{_lambda_.1} parent=1 // pred_fallthru
      _
    // Predicated region
    $region38: #{_lambda_.1} parent=1 // pred_check
      _
    $region39: #{_lambda_.1} parent=1 // pred_check_branch
      %81 = sbr.rel (0) target = $region41
    $region40: #{_lambda_.1} parent=1 // pred_region
      %83 = dma.done [#allocation7], 9216
    $region41: #{_lambda_.1} parent=1 // pred_fallthru
      _
    // Predicated region
    $region42: #{_lambda_.1} parent=1 // pred_check
      _
    $region43: #{_lambda_.1} parent=1 // pred_check_branch
      %85 = sbr.rel (0) target = $region45
    $region44: #{_lambda_.1} parent=1 // pred_region
      %87 = dma.done [#allocation7], 4096
    $region45: #{_lambda_.1} parent=1 // pred_fallthru
      _
    // Predicated region
    $region46: #{_lambda_.1} parent=1 // pred_check
      _
    $region47: #{_lambda_.1} parent=1 // pred_check_branch
      %89 = sbr.rel (0) target = $region49
    $region48: #{_lambda_.1} parent=1 // pred_region
      %91 = dma.done [#allocation10], 2048
    $region49: #{_lambda_.1} parent=1 // pred_fallthru
      _
    %v93 = vld [vmem:[%s0] sm:$0xf]
    %v94 = vld [vmem:[%s0 + $0x4] sm:$0xf]
    %95 = vst [vmem:[#allocation2 + $0x4] sm:$0xf] %v93
    %96 = vst [vmem:[#allocation2 + $0x8] sm:$0xf] %v94
    %s97 = scalar_lea.vmem %s0, 8
    %v98 = vld [vmem:[%s97] sm:$0xf]
    %v99 = vld [vmem:[%s97 + $0x4] sm:$0xf]
    %100 = vst [vmem:[#allocation2 + $0x10] sm:$0xf] %v98
    %101 = vst [vmem:[#allocation2 + $0x14] sm:$0xf] %v99
    %102 = vst [vmem:[#allocation2] sm:$0xc] 0
    %103 = vst [vmem:[#allocation2 + $0xc] sm:$0x3] 0
    %104 = vst [vmem:[#allocation2 + $0xc] sm:$0xc] 0
    %105 = vst [vmem:[#allocation2 + $0x18] sm:$0x3] 0
    %v106 = vld [vmem:[#allocation2] sm:$0xc]
    %v107 = vld [vmem:[#allocation2 + $0x4] sm:$0xf]
    %v108 = vld [vmem:[#allocation2 + $0x8] sm:$0xf]
    %v109 = vld [vmem:[#allocation2 + $0xc] sm:$0xf]
    %v110 = vld [vmem:[#allocation2 + $0x10] sm:$0xf]
    %v111 = vld [vmem:[#allocation2 + $0x14] sm:$0xf]
    %v112 = vld [vmem:[#allocation2 + $0x18] sm:$0x3]
    %v113 = vld [vmem:[#allocation4] sm:$0xf]
    %v114 = vld [vmem:[#allocation4 + $0x4] sm:$0xf]
    %v115 = vld [vmem:[#allocation4 + $0x8] sm:$0xf]
    %v116 = vld [vmem:[#allocation4 + $0xc] sm:$0xf]
    %v117 = vld [vmem:[#allocation4 + $0x10] sm:$0xf]
    %v118 = vld [vmem:[#allocation4 + $0x14] sm:$0xf]
    %v119 = vld [vmem:[#allocation4 + $0x18] sm:$0xf]
    %v120 = vld [vmem:[#allocation4 + $0x1c] sm:$0xf]
    %v121 = vld [vmem:[#allocation4 + $0x20] sm:$0xf]
    %v122 = vld [vmem:[#allocation4 + $0x24] sm:$0xf]
    %v123 = vld [vmem:[#allocation4 + $0x28] sm:$0xf]
    %v124 = vld [vmem:[#allocation4 + $0x2c] sm:$0xf]
    %v125 = vld [vmem:[#allocation4 + $0x30] sm:$0xf]
    %v126 = vld [vmem:[#allocation4 + $0x34] sm:$0xf]
    %v127 = vld [vmem:[#allocation4 + $0x38] sm:$0xf]
    %v128 = vld [vmem:[#allocation4 + $0x3c] sm:$0xf]
    %v136 = vunpack.c.l.b16 %v106
    %v137 = vunpack.c.l.b16 %v107
    %v138 = vunpack.c.l.b16 %v108
    %v139 = vunpack.c.l.b16 %v109
    %v140 = vunpack.c.l.b16 %v110
    %v141 = vunpack.c.l.b16 %v111
    %v142 = vunpack.c.l.b16 %v112
    %v143 = vpack.c.b16 %v137, %v136
    %v144 = vpack.c.b16 %v139, %v138
    %v145 = vpack.c.b16 %v141, %v140
    %v146 = vpack.c.b16 %v142, %v142
    %vm147 = vcmask 1045504
    %v148 = vrot.slane %v143, 2
    %v149 = vrot.slane %v144, 2
    %v150 = vsel %vm147, %v148, %v149
    %v151 = vrot.slane %v145, 2
    %v152 = vsel %vm147, %v149, %v151
    %v153 = vrot.slane %v146, 2
    %v154 = vsel %vm147, %v151, %v153
    %v174 = vunpack.c.l.b16 %v113
    %v175 = vunpack.c.l.b16 %v114
    %v176 = vunpack.c.l.b16 %v115
    %v177 = vunpack.c.l.b16 %v116
    %v178 = vunpack.c.l.b16 %v117
    %v179 = vunpack.c.l.b16 %v118
    %v180 = vunpack.c.l.b16 %v119
    %v181 = vunpack.c.l.b16 %v120
    %v182 = vunpack.c.l.b16 %v121
    %v183 = vunpack.c.l.b16 %v122
    %v184 = vunpack.c.l.b16 %v123
    %v185 = vunpack.c.l.b16 %v124
    %v186 = vunpack.c.l.b16 %v125
    %v187 = vunpack.c.l.b16 %v126
    %v188 = vunpack.c.l.b16 %v127
    %v189 = vunpack.c.l.b16 %v128
    %v190 = vpack.c.b16 %v175, %v174
    %v191 = vpack.c.b16 %v177, %v176
    %v192 = vpack.c.b16 %v179, %v178
    %v193 = vpack.c.b16 %v181, %v180
    %v194 = vpack.c.b16 %v183, %v182
    %v195 = vpack.c.b16 %v185, %v184
    %v196 = vpack.c.b16 %v187, %v186
    %v197 = vpack.c.b16 %v189, %v188
    %206 = vmatpush.bf16.msra.mxu0 %v197
    %207 = vmatpush.bf16.msra.mxu0 %v196
    %208 = vmatpush.bf16.msra.mxu0 %v195
    %209 = vmatpush.bf16.msra.mxu0 %v194
    %210 = vmatpush.bf16.msra.mxu0 %v193
    %211 = vmatpush.bf16.msra.mxu0 %v192
    %212 = vmatpush.bf16.msra.mxu0 %v191
    %213 = vmatpush.bf16.msra.mxu0 %v190
    %214 = vmatmul.bf16.gmra.mxu0 %v150
    %v215 = vpop.f32.mrf.mxu0
    %v216 = vadd.f32 0.0, %v215
    %v217 = vpop.f32.mrf.mxu0
    %v218 = vadd.f32 0.0, %v217
    %219 = vmatmul.bf16.gmra.mxu0 %v152
    %v220 = vpop.f32.mrf.mxu0
    %v221 = vadd.f32 0.0, %v220
    %v222 = vpop.f32.mrf.mxu0
    %v223 = vadd.f32 0.0, %v222
    %224 = vmatmul.bf16.gmra.mxu0 %v154
    %v225 = vpop.f32.mrf.mxu0
    %v226 = vadd.f32 0.0, %v225
    %v227 = vpop.f32.mrf.mxu0
    %v228 = vadd.f32 0.0, %v227
    %229 = vdwg.mxu0
    %v230 = vpack.c.bf16 %v216, %v216
    %v231 = vpack.c.bf16 %v218, %v218
    %v232 = vpack.c.bf16 %v221, %v221
    %v233 = vpack.c.bf16 %v223, %v223
    %v234 = vpack.c.bf16 %v226, %v226
    %v235 = vpack.c.bf16 %v228, %v228
    %vm242 = vcmask 1041408
    %vm243 = vcmask 1045508
    %vm244 = vmor %vm242, %vm243
    %v245 = vrot.slane %v230, 6
    %v246 = vrot.slane %v245, 4
    %v247 = vrot.slane %v231, 6
    %v248 = vsel %vm244, %v246, %v247
    %v249 = vrot.slane %v247, 4
    %v250 = vrot.slane %v232, 6
    %v251 = vsel %vm244, %v249, %v250
    %v252 = vrot.slane %v250, 4
    %v253 = vrot.slane %v233, 6
    %v254 = vsel %vm244, %v252, %v253
    %v255 = vrot.slane %v253, 4
    %v256 = vrot.slane %v234, 6
    %v257 = vsel %vm244, %v255, %v256
    %v258 = vrot.slane %v256, 4
    %v259 = vrot.slane %v235, 6
    %v260 = vsel %vm244, %v258, %v259
    %v261 = vrot.slane %v259, 4
    %269 = vst [vmem:[#allocation3] sm:$0xc] %v245
    %270 = vst [vmem:[#allocation3 + $0x4] sm:$0xf] %v248
    %271 = vst [vmem:[#allocation3 + $0x8] sm:$0xf] %v251
    %272 = vst [vmem:[#allocation3 + $0xc] sm:$0xf] %v254
    %273 = vst [vmem:[#allocation3 + $0x10] sm:$0xf] %v257
    %274 = vst [vmem:[#allocation3 + $0x14] sm:$0xf] %v260
    %275 = vst [vmem:[#allocation3 + $0x18] sm:$0x3] %v261
    %v276 = vld [vmem:[#allocation3] sm:$0xf]
    %v277 = vld [vmem:[#allocation3 + $0x4] sm:$0xf]
    %v278 = vld [vmem:[#allocation3 + $0x8] sm:$0xf]
    %v279 = vld [vmem:[#allocation3 + $0xc] sm:$0xf]
    %v280 = vld [vmem:[#allocation3 + $0x10] sm:$0xf]
    %v281 = vld [vmem:[#allocation3 + $0x14] sm:$0xf]
    %v282 = vld [vmem:[#allocation6] sm:$0xf]
    %v283 = vld [vmem:[#allocation6 + $0x4] sm:$0xf]
    %v284 = vld [vmem:[#allocation6 + $0x8] sm:$0xf]
    %v285 = vld [vmem:[#allocation6 + $0xc] sm:$0xf]
    %v286 = vld [vmem:[#allocation6 + $0x10] sm:$0xf]
    %v287 = vld [vmem:[#allocation6 + $0x14] sm:$0xf]
    %v288 = vld [vmem:[#allocation6 + $0x18] sm:$0xf]
    %v289 = vld [vmem:[#allocation6 + $0x1c] sm:$0xf]
    %v290 = vld [vmem:[#allocation6 + $0x20] sm:$0xf]
    %v291 = vld [vmem:[#allocation6 + $0x24] sm:$0xf]
    %v292 = vld [vmem:[#allocation6 + $0x28] sm:$0xf]
    %v293 = vld [vmem:[#allocation6 + $0x2c] sm:$0xf]
    %v294 = vld [vmem:[#allocation6 + $0x30] sm:$0xf]
    %v295 = vld [vmem:[#allocation6 + $0x34] sm:$0xf]
    %v296 = vld [vmem:[#allocation6 + $0x38] sm:$0xf]
    %v297 = vld [vmem:[#allocation6 + $0x3c] sm:$0xf]
    %v298 = vld [vmem:[#allocation3 + $0x18] sm:$0x1]
    %s299 = scalar_lea.vmem [#allocation6], 64
    %v300 = vld [vmem:[%s299] sm:$0xf]
    %v301 = vld [vmem:[%s299 + $0x4] sm:$0xf]
    %v302 = vld [vmem:[%s299 + $0x8] sm:$0xf]
    %v303 = vld [vmem:[%s299 + $0xc] sm:$0xf]
    %v304 = vld [vmem:[%s299 + $0x10] sm:$0xf]
    %v305 = vld [vmem:[%s299 + $0x14] sm:$0xf]
    %v306 = vld [vmem:[%s299 + $0x18] sm:$0xf]
    %v307 = vld [vmem:[%s299 + $0x1c] sm:$0xf]
    %v308 = vld [vmem:[%s299 + $0x20] sm:$0xf]
    %v309 = vld [vmem:[%s299 + $0x24] sm:$0xf]
    %v310 = vld [vmem:[%s299 + $0x28] sm:$0xf]
    %v311 = vld [vmem:[%s299 + $0x2c] sm:$0xf]
    %v312 = vld [vmem:[%s299 + $0x30] sm:$0xf]
    %v313 = vld [vmem:[%s299 + $0x34] sm:$0xf]
    %v314 = vld [vmem:[%s299 + $0x38] sm:$0xf]
    %v315 = vld [vmem:[%s299 + $0x3c] sm:$0xf]
    %v323 = vunpack.c.l.b16 %v276
    %v324 = vunpack.c.l.b16 %v277
    %v325 = vunpack.c.l.b16 %v278
    %v326 = vunpack.c.l.b16 %v279
    %v327 = vunpack.c.l.b16 %v280
    %v328 = vunpack.c.l.b16 %v281
    %v329 = vunpack.c.l.b16 %v298
    %v330 = vpack.c.b16 %v324, %v323
    %v331 = vpack.c.b16 %v326, %v325
    %v332 = vpack.c.b16 %v328, %v327
    %v333 = vpack.c.b16 %v329, %v329
    %vm334 = vsmask.f32 7424
    %v336 = vshrl.u32 %v330, 16
    %v338 = vshll.u32 %v330, 16
    %v340 = vrot.slane %v338, 1
    %v341 = vor.u32 %v336, %v340
    %v343 = vshll.u32 %v331, 16
    %v345 = vrot.slane %v343, 1
    %v346 = vsel %vm334, %v341, %v345
    %v347 = vshrl.u32 %v331, 16
    %v349 = vor.u32 %v347, %v345
    %v351 = vshll.u32 %v332, 16
    %v353 = vrot.slane %v351, 1
    %v354 = vsel %vm334, %v349, %v353
    %v355 = vshrl.u32 %v332, 16
    %v357 = vor.u32 %v355, %v353
    %v359 = vshll.u32 %v333, 16
    %v361 = vrot.slane %v359, 1
    %v362 = vsel %vm334, %v357, %v361
    %v382 = vunpack.c.l.b16 %v300
    %v383 = vunpack.c.l.b16 %v301
    %v384 = vunpack.c.l.b16 %v302
    %v385 = vunpack.c.l.b16 %v303
    %v386 = vunpack.c.l.b16 %v304
    %v387 = vunpack.c.l.b16 %v305
    %v388 = vunpack.c.l.b16 %v306
    %v389 = vunpack.c.l.b16 %v307
    %v390 = vunpack.c.l.b16 %v308
    %v391 = vunpack.c.l.b16 %v309
    %v392 = vunpack.c.l.b16 %v310
    %v393 = vunpack.c.l.b16 %v311
    %v394 = vunpack.c.l.b16 %v312
    %v395 = vunpack.c.l.b16 %v313
    %v396 = vunpack.c.l.b16 %v314
    %v397 = vunpack.c.l.b16 %v315
    %v398 = vpack.c.b16 %v383, %v382
    %v399 = vpack.c.b16 %v385, %v384
    %v400 = vpack.c.b16 %v387, %v386
    %v401 = vpack.c.b16 %v389, %v388
    %v402 = vpack.c.b16 %v391, %v390
    %v403 = vpack.c.b16 %v393, %v392
    %v404 = vpack.c.b16 %v395, %v394
    %v405 = vpack.c.b16 %v397, %v396
    %414 = vmatpush.bf16.msra.mxu0 %v405
    %415 = vmatpush.bf16.msra.mxu0 %v404
    %416 = vmatpush.bf16.msra.mxu0 %v403
    %417 = vmatpush.bf16.msra.mxu0 %v402
    %418 = vmatpush.bf16.msra.mxu0 %v401
    %419 = vmatpush.bf16.msra.mxu0 %v400
    %420 = vmatpush.bf16.msra.mxu0 %v399
    %421 = vmatpush.bf16.msra.mxu0 %v398
    %422 = vmatmul.bf16.gmra.mxu0 %v346
    %v423 = vpop.f32.mrf.mxu0
    %v424 = vadd.f32 0.0, %v423
    %v425 = vpop.f32.mrf.mxu0
    %v426 = vadd.f32 0.0, %v425
    %427 = vmatmul.bf16.gmra.mxu0 %v354
    %v428 = vpop.f32.mrf.mxu0
    %v429 = vadd.f32 0.0, %v428
    %v430 = vpop.f32.mrf.mxu0
    %v431 = vadd.f32 0.0, %v430
    %432 = vmatmul.bf16.gmra.mxu0 %v362
    %v433 = vpop.f32.mrf.mxu0
    %v434 = vadd.f32 0.0, %v433
    %v435 = vpop.f32.mrf.mxu0
    %v436 = vadd.f32 0.0, %v435
    %437 = vdwg.mxu0
    %v457 = vunpack.c.l.b16 %v282
    %v458 = vunpack.c.l.b16 %v283
    %v459 = vunpack.c.l.b16 %v284
    %v460 = vunpack.c.l.b16 %v285
    %v461 = vunpack.c.l.b16 %v286
    %v462 = vunpack.c.l.b16 %v287
    %v463 = vunpack.c.l.b16 %v288
    %v464 = vunpack.c.l.b16 %v289
    %v465 = vunpack.c.l.b16 %v290
    %v466 = vunpack.c.l.b16 %v291
    %v467 = vunpack.c.l.b16 %v292
    %v468 = vunpack.c.l.b16 %v293
    %v469 = vunpack.c.l.b16 %v294
    %v470 = vunpack.c.l.b16 %v295
    %v471 = vunpack.c.l.b16 %v296
    %v472 = vunpack.c.l.b16 %v297
    %v473 = vpack.c.b16 %v458, %v457
    %v474 = vpack.c.b16 %v460, %v459
    %v475 = vpack.c.b16 %v462, %v461
    %v476 = vpack.c.b16 %v464, %v463
    %v477 = vpack.c.b16 %v466, %v465
    %v478 = vpack.c.b16 %v468, %v467
    %v479 = vpack.c.b16 %v470, %v469
    %v480 = vpack.c.b16 %v472, %v471
    %489 = vmatpush.bf16.msra.mxu0 %v480
    %490 = vmatpush.bf16.msra.mxu0 %v479
    %491 = vmatpush.bf16.msra.mxu0 %v478
    %492 = vmatpush.bf16.msra.mxu0 %v477
    %493 = vmatpush.bf16.msra.mxu0 %v476
    %494 = vmatpush.bf16.msra.mxu0 %v475
    %495 = vmatpush.bf16.msra.mxu0 %v474
    %496 = vmatpush.bf16.msra.mxu0 %v473
    %497 = vmatmul.bf16.gmra.mxu0 %v330
    %v498 = vpop.f32.mrf.mxu0
    %v499 = vadd.f32 %v424, %v498
    %v500 = vpop.f32.mrf.mxu0
    %v501 = vadd.f32 %v426, %v500
    %502 = vmatmul.bf16.gmra.mxu0 %v331
    %v503 = vpop.f32.mrf.mxu0
    %v504 = vadd.f32 %v429, %v503
    %v505 = vpop.f32.mrf.mxu0
    %v506 = vadd.f32 %v431, %v505
    %507 = vmatmul.bf16.gmra.mxu0 %v332
    %v508 = vpop.f32.mrf.mxu0
    %v509 = vadd.f32 %v434, %v508
    %v510 = vpop.f32.mrf.mxu0
    %v511 = vadd.f32 %v436, %v510
    %512 = vdwg.mxu0
    %v513 = vld [vmem:[#allocation3] sm:$0xe]
    %s514 = scalar_lea.vmem [#allocation6], 128
    %v515 = vld [vmem:[%s514] sm:$0xf]
    %v516 = vld [vmem:[%s514 + $0x4] sm:$0xf]
    %v517 = vld [vmem:[%s514 + $0x8] sm:$0xf]
    %v518 = vld [vmem:[%s514 + $0xc] sm:$0xf]
    %v519 = vld [vmem:[%s514 + $0x10] sm:$0xf]
    %v520 = vld [vmem:[%s514 + $0x14] sm:$0xf]
    %v521 = vld [vmem:[%s514 + $0x18] sm:$0xf]
    %v522 = vld [vmem:[%s514 + $0x1c] sm:$0xf]
    %v523 = vld [vmem:[%s514 + $0x20] sm:$0xf]
    %v524 = vld [vmem:[%s514 + $0x24] sm:$0xf]
    %v525 = vld [vmem:[%s514 + $0x28] sm:$0xf]
    %v526 = vld [vmem:[%s514 + $0x2c] sm:$0xf]
    %v527 = vld [vmem:[%s514 + $0x30] sm:$0xf]
    %v528 = vld [vmem:[%s514 + $0x34] sm:$0xf]
    %v529 = vld [vmem:[%s514 + $0x38] sm:$0xf]
    %v530 = vld [vmem:[%s514 + $0x3c] sm:$0xf]
    %v532 = vunpack.c.l.b16 %v513
    %v533 = vpack.c.b16 %v324, %v532
    %vm534 = vcmask 1046528
    %v535 = vrot.slane %v533, 1
    %v536 = vrot.slane %v331, 1
    %v537 = vsel %vm534, %v535, %v536
    %v538 = vrot.slane %v332, 1
    %v539 = vsel %vm534, %v536, %v538
    %v540 = vrot.slane %v333, 1
    %v541 = vsel %vm534, %v538, %v540
    %v561 = vunpack.c.l.b16 %v515
    %v562 = vunpack.c.l.b16 %v516
    %v563 = vunpack.c.l.b16 %v517
    %v564 = vunpack.c.l.b16 %v518
    %v565 = vunpack.c.l.b16 %v519
    %v566 = vunpack.c.l.b16 %v520
    %v567 = vunpack.c.l.b16 %v521
    %v568 = vunpack.c.l.b16 %v522
    %v569 = vunpack.c.l.b16 %v523
    %v570 = vunpack.c.l.b16 %v524
    %v571 = vunpack.c.l.b16 %v525
    %v572 = vunpack.c.l.b16 %v526
    %v573 = vunpack.c.l.b16 %v527
    %v574 = vunpack.c.l.b16 %v528
    %v575 = vunpack.c.l.b16 %v529
    %v576 = vunpack.c.l.b16 %v530
    %v577 = vpack.c.b16 %v562, %v561
    %v578 = vpack.c.b16 %v564, %v563
    %v579 = vpack.c.b16 %v566, %v565
    %v580 = vpack.c.b16 %v568, %v567
    %v581 = vpack.c.b16 %v570, %v569
    %v582 = vpack.c.b16 %v572, %v571
    %v583 = vpack.c.b16 %v574, %v573
    %v584 = vpack.c.b16 %v576, %v575
    %593 = vmatpush.bf16.msra.mxu0 %v584
    %594 = vmatpush.bf16.msra.mxu0 %v583
    %595 = vmatpush.bf16.msra.mxu0 %v582
    %596 = vmatpush.bf16.msra.mxu0 %v581
    %597 = vmatpush.bf16.msra.mxu0 %v580
    %598 = vmatpush.bf16.msra.mxu0 %v579
    %599 = vmatpush.bf16.msra.mxu0 %v578
    %600 = vmatpush.bf16.msra.mxu0 %v577
    %601 = vmatmul.bf16.gmra.mxu0 %v537
    %v602 = vpop.f32.mrf.mxu0
    %v603 = vadd.f32 0.0, %v602
    %v604 = vpop.f32.mrf.mxu0
    %v605 = vadd.f32 0.0, %v604
    %606 = vmatmul.bf16.gmra.mxu0 %v539
    %v607 = vpop.f32.mrf.mxu0
    %v608 = vadd.f32 0.0, %v607
    %v609 = vpop.f32.mrf.mxu0
    %v610 = vadd.f32 0.0, %v609
    %611 = vmatmul.bf16.gmra.mxu0 %v541
    %v612 = vpop.f32.mrf.mxu0
    %v613 = vadd.f32 0.0, %v612
    %v614 = vpop.f32.mrf.mxu0
    %v615 = vadd.f32 0.0, %v614
    %616 = vdwg.mxu0
    %v617 = vadd.f32 %v499, %v603
    %v618 = vadd.f32 %v501, %v605
    %v619 = vadd.f32 %v504, %v608
    %v620 = vadd.f32 %v506, %v610
    %v621 = vadd.f32 %v509, %v613
    %v622 = vadd.f32 %v511, %v615
    %v623 = vld [vmem:[#allocation3 + $0x18] sm:$0x3]
    %s624 = scalar_lea.vmem [#allocation6], 192
    %v625 = vld [vmem:[%s624] sm:$0xf]
    %v626 = vld [vmem:[%s624 + $0x4] sm:$0xf]
    %v627 = vld [vmem:[%s624 + $0x8] sm:$0xf]
    %v628 = vld [vmem:[%s624 + $0xc] sm:$0xf]
    %v629 = vld [vmem:[%s624 + $0x10] sm:$0xf]
    %v630 = vld [vmem:[%s624 + $0x14] sm:$0xf]
    %v631 = vld [vmem:[%s624 + $0x18] sm:$0xf]
    %v632 = vld [vmem:[%s624 + $0x1c] sm:$0xf]
    %v633 = vld [vmem:[%s624 + $0x20] sm:$0xf]
    %v634 = vld [vmem:[%s624 + $0x24] sm:$0xf]
    %v635 = vld [vmem:[%s624 + $0x28] sm:$0xf]
    %v636 = vld [vmem:[%s624 + $0x2c] sm:$0xf]
    %v637 = vld [vmem:[%s624 + $0x30] sm:$0xf]
    %v638 = vld [vmem:[%s624 + $0x34] sm:$0xf]
    %v639 = vld [vmem:[%s624 + $0x38] sm:$0xf]
    %v640 = vld [vmem:[%s624 + $0x3c] sm:$0xf]
    %v642 = vunpack.c.l.b16 %v623
    %v643 = vpack.c.b16 %v642, %v642
    %vm644 = vsmask.f32 6400
    %v646 = vshrl.u32 %v533, 16
    %v648 = vrot.slane %v646, 1
    %v649 = vshll.u32 %v533, 16
    %v651 = vrot.slane %v649, 2
    %v652 = vor.u32 %v648, %v651
    %v653 = vrot.slane %v347, 1
    %v654 = vrot.slane %v343, 2
    %v655 = vor.u32 %v653, %v654
    %v656 = vsel %vm644, %v652, %v655
    %v657 = vrot.slane %v355, 1
    %v658 = vrot.slane %v351, 2
    %v659 = vor.u32 %v657, %v658
    %v660 = vsel %vm644, %v655, %v659
    %v662 = vshrl.u32 %v643, 16
    %v664 = vrot.slane %v662, 1
    %v665 = vshll.u32 %v643, 16
    %v667 = vrot.slane %v665, 2
    %v668 = vor.u32 %v664, %v667
    %v669 = vsel %vm644, %v659, %v668
    %v689 = vunpack.c.l.b16 %v625
    %v690 = vunpack.c.l.b16 %v626
    %v691 = vunpack.c.l.b16 %v627
    %v692 = vunpack.c.l.b16 %v628
    %v693 = vunpack.c.l.b16 %v629
    %v694 = vunpack.c.l.b16 %v630
    %v695 = vunpack.c.l.b16 %v631
    %v696 = vunpack.c.l.b16 %v632
    %v697 = vunpack.c.l.b16 %v633
    %v698 = vunpack.c.l.b16 %v634
    %v699 = vunpack.c.l.b16 %v635
    %v700 = vunpack.c.l.b16 %v636
    %v701 = vunpack.c.l.b16 %v637
    %v702 = vunpack.c.l.b16 %v638
    %v703 = vunpack.c.l.b16 %v639
    %v704 = vunpack.c.l.b16 %v640
    %v705 = vpack.c.b16 %v690, %v689
    %v706 = vpack.c.b16 %v692, %v691
    %v707 = vpack.c.b16 %v694, %v693
    %v708 = vpack.c.b16 %v696, %v695
    %v709 = vpack.c.b16 %v698, %v697
    %v710 = vpack.c.b16 %v700, %v699
    %v711 = vpack.c.b16 %v702, %v701
    %v712 = vpack.c.b16 %v704, %v703
    %721 = vmatpush.bf16.msra.mxu0 %v712
    %722 = vmatpush.bf16.msra.mxu0 %v711
    %723 = vmatpush.bf16.msra.mxu0 %v710
    %724 = vmatpush.bf16.msra.mxu0 %v709
    %725 = vmatpush.bf16.msra.mxu0 %v708
    %726 = vmatpush.bf16.msra.mxu0 %v707
    %727 = vmatpush.bf16.msra.mxu0 %v706
    %728 = vmatpush.bf16.msra.mxu0 %v705
    %729 = vmatmul.bf16.gmra.mxu0 %v656
    %v730 = vpop.f32.mrf.mxu0
    %v731 = vadd.f32 0.0, %v730
    %v732 = vpop.f32.mrf.mxu0
    %v733 = vadd.f32 0.0, %v732
    %734 = vmatmul.bf16.gmra.mxu0 %v660
    %v735 = vpop.f32.mrf.mxu0
    %v736 = vadd.f32 0.0, %v735
    %v737 = vpop.f32.mrf.mxu0
    %v738 = vadd.f32 0.0, %v737
    %739 = vmatmul.bf16.gmra.mxu0 %v669
    %v740 = vpop.f32.mrf.mxu0
    %v741 = vadd.f32 0.0, %v740
    %v742 = vpop.f32.mrf.mxu0
    %v743 = vadd.f32 0.0, %v742
    %744 = vdwg.mxu0
    %v745 = vadd.f32 %v617, %v731
    %v746 = vadd.f32 %v618, %v733
    %v747 = vadd.f32 %v619, %v736
    %v748 = vadd.f32 %v620, %v738
    %v749 = vadd.f32 %v621, %v741
    %v750 = vadd.f32 %v622, %v743
    %v751 = vld [vmem:[#allocation3] sm:$0xc]
    %s752 = scalar_lea.vmem [#allocation6], 256
    %v753 = vld [vmem:[%s752] sm:$0xf]
    %v754 = vld [vmem:[%s752 + $0x4] sm:$0xf]
    %v755 = vld [vmem:[%s752 + $0x8] sm:$0xf]
    %v756 = vld [vmem:[%s752 + $0xc] sm:$0xf]
    %v757 = vld [vmem:[%s752 + $0x10] sm:$0xf]
    %v758 = vld [vmem:[%s752 + $0x14] sm:$0xf]
    %v759 = vld [vmem:[%s752 + $0x18] sm:$0xf]
    %v760 = vld [vmem:[%s752 + $0x1c] sm:$0xf]
    %v761 = vld [vmem:[%s752 + $0x20] sm:$0xf]
    %v762 = vld [vmem:[%s752 + $0x24] sm:$0xf]
    %v763 = vld [vmem:[%s752 + $0x28] sm:$0xf]
    %v764 = vld [vmem:[%s752 + $0x2c] sm:$0xf]
    %v765 = vld [vmem:[%s752 + $0x30] sm:$0xf]
    %v766 = vld [vmem:[%s752 + $0x34] sm:$0xf]
    %v767 = vld [vmem:[%s752 + $0x38] sm:$0xf]
    %v768 = vld [vmem:[%s752 + $0x3c] sm:$0xf]
    %v770 = vunpack.c.l.b16 %v751
    %v771 = vpack.c.b16 %v324, %v770
    %v772 = vrot.slane %v771, 2
    %v773 = vrot.slane %v331, 2
    %v774 = vsel %vm147, %v772, %v773
    %v775 = vrot.slane %v332, 2
    %v776 = vsel %vm147, %v773, %v775
    %v777 = vrot.slane %v643, 2
    %v778 = vsel %vm147, %v775, %v777
    %v798 = vunpack.c.l.b16 %v753
    %v799 = vunpack.c.l.b16 %v754
    %v800 = vunpack.c.l.b16 %v755
    %v801 = vunpack.c.l.b16 %v756
    %v802 = vunpack.c.l.b16 %v757
    %v803 = vunpack.c.l.b16 %v758
    %v804 = vunpack.c.l.b16 %v759
    %v805 = vunpack.c.l.b16 %v760
    %v806 = vunpack.c.l.b16 %v761
    %v807 = vunpack.c.l.b16 %v762
    %v808 = vunpack.c.l.b16 %v763
    %v809 = vunpack.c.l.b16 %v764
    %v810 = vunpack.c.l.b16 %v765
    %v811 = vunpack.c.l.b16 %v766
    %v812 = vunpack.c.l.b16 %v767
    %v813 = vunpack.c.l.b16 %v768
    %v814 = vpack.c.b16 %v799, %v798
    %v815 = vpack.c.b16 %v801, %v800
    %v816 = vpack.c.b16 %v803, %v802
    %v817 = vpack.c.b16 %v805, %v804
    %v818 = vpack.c.b16 %v807, %v806
    %v819 = vpack.c.b16 %v809, %v808
    %v820 = vpack.c.b16 %v811, %v810
    %v821 = vpack.c.b16 %v813, %v812
    %830 = vmatpush.bf16.msra.mxu0 %v821
    %831 = vmatpush.bf16.msra.mxu0 %v820
    %832 = vmatpush.bf16.msra.mxu0 %v819
    %833 = vmatpush.bf16.msra.mxu0 %v818
    %834 = vmatpush.bf16.msra.mxu0 %v817
    %835 = vmatpush.bf16.msra.mxu0 %v816
    %836 = vmatpush.bf16.msra.mxu0 %v815
    %837 = vmatpush.bf16.msra.mxu0 %v814
    %838 = vmatmul.bf16.gmra.mxu0 %v774
    %v839 = vpop.f32.mrf.mxu0
    %v840 = vadd.f32 0.0, %v839
    %v841 = vpop.f32.mrf.mxu0
    %v842 = vadd.f32 0.0, %v841
    %843 = vmatmul.bf16.gmra.mxu0 %v776
    %v844 = vpop.f32.mrf.mxu0
    %v845 = vadd.f32 0.0, %v844
    %v846 = vpop.f32.mrf.mxu0
    %v847 = vadd.f32 0.0, %v846
    %848 = vmatmul.bf16.gmra.mxu0 %v778
    %v849 = vpop.f32.mrf.mxu0
    %v850 = vadd.f32 0.0, %v849
    %v851 = vpop.f32.mrf.mxu0
    %v852 = vadd.f32 0.0, %v851
    %853 = vdwg.mxu0
    %v854 = vadd.f32 %v745, %v840
    %v855 = vadd.f32 %v746, %v842
    %v856 = vadd.f32 %v747, %v845
    %v857 = vadd.f32 %v748, %v847
    %v858 = vadd.f32 %v749, %v850
    %v859 = vadd.f32 %v750, %v852
    %v860 = vld [vmem:[#allocation3 + $0x18] sm:$0x7]
    %s861 = scalar_lea.vmem [#allocation6], 320
    %v862 = vld [vmem:[%s861] sm:$0xf]
    %v863 = vld [vmem:[%s861 + $0x4] sm:$0xf]
    %v864 = vld [vmem:[%s861 + $0x8] sm:$0xf]
    %v865 = vld [vmem:[%s861 + $0xc] sm:$0xf]
    %v866 = vld [vmem:[%s861 + $0x10] sm:$0xf]
    %v867 = vld [vmem:[%s861 + $0x14] sm:$0xf]
    %v868 = vld [vmem:[%s861 + $0x18] sm:$0xf]
    %v869 = vld [vmem:[%s861 + $0x1c] sm:$0xf]
    %v870 = vld [vmem:[%s861 + $0x20] sm:$0xf]
    %v871 = vld [vmem:[%s861 + $0x24] sm:$0xf]
    %v872 = vld [vmem:[%s861 + $0x28] sm:$0xf]
    %v873 = vld [vmem:[%s861 + $0x2c] sm:$0xf]
    %v874 = vld [vmem:[%s861 + $0x30] sm:$0xf]
    %v875 = vld [vmem:[%s861 + $0x34] sm:$0xf]
    %v876 = vld [vmem:[%s861 + $0x38] sm:$0xf]
    %v877 = vld [vmem:[%s861 + $0x3c] sm:$0xf]
    %v879 = vunpack.c.l.b16 %v860
    %v880 = vpack.c.b16 %v879, %v879
    %vm881 = vsmask.f32 5376
    %v883 = vshrl.u32 %v771, 16
    %v885 = vrot.slane %v883, 2
    %v886 = vshll.u32 %v771, 16
    %v888 = vrot.slane %v886, 3
    %v889 = vor.u32 %v885, %v888
    %v890 = vrot.slane %v347, 2
    %v891 = vrot.slane %v343, 3
    %v892 = vor.u32 %v890, %v891
    %v893 = vsel %vm881, %v889, %v892
    %v894 = vrot.slane %v355, 2
    %v895 = vrot.slane %v351, 3
    %v896 = vor.u32 %v894, %v895
    %v897 = vsel %vm881, %v892, %v896
    %v899 = vshrl.u32 %v880, 16
    %v901 = vrot.slane %v899, 2
    %v902 = vshll.u32 %v880, 16
    %v904 = vrot.slane %v902, 3
    %v905 = vor.u32 %v901, %v904
    %v906 = vsel %vm881, %v896, %v905
    %v926 = vunpack.c.l.b16 %v862
    %v927 = vunpack.c.l.b16 %v863
    %v928 = vunpack.c.l.b16 %v864
    %v929 = vunpack.c.l.b16 %v865
    %v930 = vunpack.c.l.b16 %v866
    %v931 = vunpack.c.l.b16 %v867
    %v932 = vunpack.c.l.b16 %v868
    %v933 = vunpack.c.l.b16 %v869
    %v934 = vunpack.c.l.b16 %v870
    %v935 = vunpack.c.l.b16 %v871
    %v936 = vunpack.c.l.b16 %v872
    %v937 = vunpack.c.l.b16 %v873
    %v938 = vunpack.c.l.b16 %v874
    %v939 = vunpack.c.l.b16 %v875
    %v940 = vunpack.c.l.b16 %v876
    %v941 = vunpack.c.l.b16 %v877
    %v942 = vpack.c.b16 %v927, %v926
    %v943 = vpack.c.b16 %v929, %v928
    %v944 = vpack.c.b16 %v931, %v930
    %v945 = vpack.c.b16 %v933, %v932
    %v946 = vpack.c.b16 %v935, %v934
    %v947 = vpack.c.b16 %v937, %v936
    %v948 = vpack.c.b16 %v939, %v938
    %v949 = vpack.c.b16 %v941, %v940
    %958 = vmatpush.bf16.msra.mxu0 %v949
    %959 = vmatpush.bf16.msra.mxu0 %v948
    %960 = vmatpush.bf16.msra.mxu0 %v947
    %961 = vmatpush.bf16.msra.mxu0 %v946
    %962 = vmatpush.bf16.msra.mxu0 %v945
    %963 = vmatpush.bf16.msra.mxu0 %v944
    %964 = vmatpush.bf16.msra.mxu0 %v943
    %965 = vmatpush.bf16.msra.mxu0 %v942
    %966 = vmatmul.bf16.gmra.mxu0 %v893
    %v967 = vpop.f32.mrf.mxu0
    %v968 = vadd.f32 0.0, %v967
    %v969 = vpop.f32.mrf.mxu0
    %v970 = vadd.f32 0.0, %v969
    %971 = vmatmul.bf16.gmra.mxu0 %v897
    %v972 = vpop.f32.mrf.mxu0
    %v973 = vadd.f32 0.0, %v972
    %v974 = vpop.f32.mrf.mxu0
    %v975 = vadd.f32 0.0, %v974
    %976 = vmatmul.bf16.gmra.mxu0 %v906
    %v977 = vpop.f32.mrf.mxu0
    %v978 = vadd.f32 0.0, %v977
    %v979 = vpop.f32.mrf.mxu0
    %v980 = vadd.f32 0.0, %v979
    %981 = vdwg.mxu0
    %v982 = vadd.f32 %v854, %v968
    %v983 = vadd.f32 %v855, %v970
    %v984 = vadd.f32 %v856, %v973
    %v985 = vadd.f32 %v857, %v975
    %v986 = vadd.f32 %v858, %v978
    %v987 = vadd.f32 %v859, %v980
    %v988 = vld [vmem:[#allocation3] sm:$0x8]
    %s989 = scalar_lea.vmem [#allocation6], 384
    %v990 = vld [vmem:[%s989] sm:$0xf]
    %v991 = vld [vmem:[%s989 + $0x4] sm:$0xf]
    %v992 = vld [vmem:[%s989 + $0x8] sm:$0xf]
    %v993 = vld [vmem:[%s989 + $0xc] sm:$0xf]
    %v994 = vld [vmem:[%s989 + $0x10] sm:$0xf]
    %v995 = vld [vmem:[%s989 + $0x14] sm:$0xf]
    %v996 = vld [vmem:[%s989 + $0x18] sm:$0xf]
    %v997 = vld [vmem:[%s989 + $0x1c] sm:$0xf]
    %v998 = vld [vmem:[%s989 + $0x20] sm:$0xf]
    %v999 = vld [vmem:[%s989 + $0x24] sm:$0xf]
    %v1000 = vld [vmem:[%s989 + $0x28] sm:$0xf]
    %v1001 = vld [vmem:[%s989 + $0x2c] sm:$0xf]
    %v1002 = vld [vmem:[%s989 + $0x30] sm:$0xf]
    %v1003 = vld [vmem:[%s989 + $0x34] sm:$0xf]
    %v1004 = vld [vmem:[%s989 + $0x38] sm:$0xf]
    %v1005 = vld [vmem:[%s989 + $0x3c] sm:$0xf]
    %v1007 = vunpack.c.l.b16 %v988
    %v1008 = vpack.c.b16 %v324, %v1007
    %vm1009 = vcmask 1044480
    %v1010 = vrot.slane %v1008, 3
    %v1011 = vrot.slane %v331, 3
    %v1012 = vsel %vm1009, %v1010, %v1011
    %v1013 = vrot.slane %v332, 3
    %v1014 = vsel %vm1009, %v1011, %v1013
    %v1015 = vrot.slane %v880, 3
    %v1016 = vsel %vm1009, %v1013, %v1015
    %v1036 = vunpack.c.l.b16 %v990
    %v1037 = vunpack.c.l.b16 %v991
    %v1038 = vunpack.c.l.b16 %v992
    %v1039 = vunpack.c.l.b16 %v993
    %v1040 = vunpack.c.l.b16 %v994
    %v1041 = vunpack.c.l.b16 %v995
    %v1042 = vunpack.c.l.b16 %v996
    %v1043 = vunpack.c.l.b16 %v997
    %v1044 = vunpack.c.l.b16 %v998
    %v1045 = vunpack.c.l.b16 %v999
    %v1046 = vunpack.c.l.b16 %v1000
    %v1047 = vunpack.c.l.b16 %v1001
    %v1048 = vunpack.c.l.b16 %v1002
    %v1049 = vunpack.c.l.b16 %v1003
    %v1050 = vunpack.c.l.b16 %v1004
    %v1051 = vunpack.c.l.b16 %v1005
    %v1052 = vpack.c.b16 %v1037, %v1036
    %v1053 = vpack.c.b16 %v1039, %v1038
    %v1054 = vpack.c.b16 %v1041, %v1040
    %v1055 = vpack.c.b16 %v1043, %v1042
    %v1056 = vpack.c.b16 %v1045, %v1044
    %v1057 = vpack.c.b16 %v1047, %v1046
    %v1058 = vpack.c.b16 %v1049, %v1048
    %v1059 = vpack.c.b16 %v1051, %v1050
    %1068 = vmatpush.bf16.msra.mxu0 %v1059
    %1069 = vmatpush.bf16.msra.mxu0 %v1058
    %1070 = vmatpush.bf16.msra.mxu0 %v1057
    %1071 = vmatpush.bf16.msra.mxu0 %v1056
    %1072 = vmatpush.bf16.msra.mxu0 %v1055
    %1073 = vmatpush.bf16.msra.mxu0 %v1054
    %1074 = vmatpush.bf16.msra.mxu0 %v1053
    %1075 = vmatpush.bf16.msra.mxu0 %v1052
    %1076 = vmatmul.bf16.gmra.mxu0 %v1012
    %v1077 = vpop.f32.mrf.mxu0
    %v1078 = vadd.f32 0.0, %v1077
    %v1079 = vpop.f32.mrf.mxu0
    %v1080 = vadd.f32 0.0, %v1079
    %1081 = vmatmul.bf16.gmra.mxu0 %v1014
    %v1082 = vpop.f32.mrf.mxu0
    %v1083 = vadd.f32 0.0, %v1082
    %v1084 = vpop.f32.mrf.mxu0
    %v1085 = vadd.f32 0.0, %v1084
    %1086 = vmatmul.bf16.gmra.mxu0 %v1016
    %v1087 = vpop.f32.mrf.mxu0
    %v1088 = vadd.f32 0.0, %v1087
    %v1089 = vpop.f32.mrf.mxu0
    %v1090 = vadd.f32 0.0, %v1089
    %1091 = vdwg.mxu0
    %v1092 = vadd.f32 %v982, %v1078
    %v1093 = vadd.f32 %v983, %v1080
    %v1094 = vadd.f32 %v984, %v1083
    %v1095 = vadd.f32 %v985, %v1085
    %v1096 = vadd.f32 %v986, %v1088
    %v1097 = vadd.f32 %v987, %v1090
    %v1098 = vld [vmem:[#allocation3 + $0x18] sm:$0xf]
    %s1099 = scalar_lea.vmem [#allocation6], 448
    %v1100 = vld [vmem:[%s1099] sm:$0xf]
    %v1101 = vld [vmem:[%s1099 + $0x4] sm:$0xf]
    %v1102 = vld [vmem:[%s1099 + $0x8] sm:$0xf]
    %v1103 = vld [vmem:[%s1099 + $0xc] sm:$0xf]
    %v1104 = vld [vmem:[%s1099 + $0x10] sm:$0xf]
    %v1105 = vld [vmem:[%s1099 + $0x14] sm:$0xf]
    %v1106 = vld [vmem:[%s1099 + $0x18] sm:$0xf]
    %v1107 = vld [vmem:[%s1099 + $0x1c] sm:$0xf]
    %v1108 = vld [vmem:[%s1099 + $0x20] sm:$0xf]
    %v1109 = vld [vmem:[%s1099 + $0x24] sm:$0xf]
    %v1110 = vld [vmem:[%s1099 + $0x28] sm:$0xf]
    %v1111 = vld [vmem:[%s1099 + $0x2c] sm:$0xf]
    %v1112 = vld [vmem:[%s1099 + $0x30] sm:$0xf]
    %v1113 = vld [vmem:[%s1099 + $0x34] sm:$0xf]
    %v1114 = vld [vmem:[%s1099 + $0x38] sm:$0xf]
    %v1115 = vld [vmem:[%s1099 + $0x3c] sm:$0xf]
    %v1117 = vunpack.c.l.b16 %v1098
    %v1118 = vpack.c.b16 %v1117, %v1117
    %vm1119 = vsmask.f32 4352
    %v1121 = vshrl.u32 %v1008, 16
    %v1123 = vrot.slane %v1121, 3
    %v1124 = vshll.u32 %v1008, 16
    %v1126 = vrot.slane %v1124, 4
    %v1127 = vor.u32 %v1123, %v1126
    %v1128 = vrot.slane %v347, 3
    %v1129 = vrot.slane %v343, 4
    %v1130 = vor.u32 %v1128, %v1129
    %v1131 = vsel %vm1119, %v1127, %v1130
    %v1132 = vrot.slane %v355, 3
    %v1133 = vrot.slane %v351, 4
    %v1134 = vor.u32 %v1132, %v1133
    %v1135 = vsel %vm1119, %v1130, %v1134
    %v1137 = vshrl.u32 %v1118, 16
    %v1139 = vrot.slane %v1137, 3
    %v1140 = vshll.u32 %v1118, 16
    %v1142 = vrot.slane %v1140, 4
    %v1143 = vor.u32 %v1139, %v1142
    %v1144 = vsel %vm1119, %v1134, %v1143
    %v1164 = vunpack.c.l.b16 %v1100
    %v1165 = vunpack.c.l.b16 %v1101
    %v1166 = vunpack.c.l.b16 %v1102
    %v1167 = vunpack.c.l.b16 %v1103
    %v1168 = vunpack.c.l.b16 %v1104
    %v1169 = vunpack.c.l.b16 %v1105
    %v1170 = vunpack.c.l.b16 %v1106
    %v1171 = vunpack.c.l.b16 %v1107
    %v1172 = vunpack.c.l.b16 %v1108
    %v1173 = vunpack.c.l.b16 %v1109
    %v1174 = vunpack.c.l.b16 %v1110
    %v1175 = vunpack.c.l.b16 %v1111
    %v1176 = vunpack.c.l.b16 %v1112
    %v1177 = vunpack.c.l.b16 %v1113
    %v1178 = vunpack.c.l.b16 %v1114
    %v1179 = vunpack.c.l.b16 %v1115
    %v1180 = vpack.c.b16 %v1165, %v1164
    %v1181 = vpack.c.b16 %v1167, %v1166
    %v1182 = vpack.c.b16 %v1169, %v1168
    %v1183 = vpack.c.b16 %v1171, %v1170
    %v1184 = vpack.c.b16 %v1173, %v1172
    %v1185 = vpack.c.b16 %v1175, %v1174
    %v1186 = vpack.c.b16 %v1177, %v1176
    %v1187 = vpack.c.b16 %v1179, %v1178
    %1196 = vmatpush.bf16.msra.mxu0 %v1187
    %1197 = vmatpush.bf16.msra.mxu0 %v1186
    %1198 = vmatpush.bf16.msra.mxu0 %v1185
    %1199 = vmatpush.bf16.msra.mxu0 %v1184
    %1200 = vmatpush.bf16.msra.mxu0 %v1183
    %1201 = vmatpush.bf16.msra.mxu0 %v1182
    %1202 = vmatpush.bf16.msra.mxu0 %v1181
    %1203 = vmatpush.bf16.msra.mxu0 %v1180
    %1204 = vmatmul.bf16.gmra.mxu0 %v1131
    %v1205 = vpop.f32.mrf.mxu0
    %v1206 = vadd.f32 0.0, %v1205
    %v1207 = vpop.f32.mrf.mxu0
    %v1208 = vadd.f32 0.0, %v1207
    %1209 = vmatmul.bf16.gmra.mxu0 %v1135
    %v1210 = vpop.f32.mrf.mxu0
    %v1211 = vadd.f32 0.0, %v1210
    %v1212 = vpop.f32.mrf.mxu0
    %v1213 = vadd.f32 0.0, %v1212
    %1214 = vmatmul.bf16.gmra.mxu0 %v1144
    %v1215 = vpop.f32.mrf.mxu0
    %v1216 = vadd.f32 0.0, %v1215
    %v1217 = vpop.f32.mrf.mxu0
    %v1218 = vadd.f32 0.0, %v1217
    %1219 = vdwg.mxu0
    %v1220 = vadd.f32 %v1092, %v1206
    %v1221 = vadd.f32 %v1093, %v1208
    %v1222 = vadd.f32 %v1094, %v1211
    %v1223 = vadd.f32 %v1095, %v1213
    %v1224 = vadd.f32 %v1096, %v1216
    %v1225 = vadd.f32 %v1097, %v1218
    %s1226 = scalar_lea.vmem [#allocation6], 512
    %v1227 = vld [vmem:[%s1226] sm:$0xf]
    %v1228 = vld [vmem:[%s1226 + $0x4] sm:$0xf]
    %v1229 = vld [vmem:[%s1226 + $0x8] sm:$0xf]
    %v1230 = vld [vmem:[%s1226 + $0xc] sm:$0xf]
    %v1231 = vld [vmem:[%s1226 + $0x10] sm:$0xf]
    %v1232 = vld [vmem:[%s1226 + $0x14] sm:$0xf]
    %v1233 = vld [vmem:[%s1226 + $0x18] sm:$0xf]
    %v1234 = vld [vmem:[%s1226 + $0x1c] sm:$0xf]
    %v1235 = vld [vmem:[%s1226 + $0x20] sm:$0xf]
    %v1236 = vld [vmem:[%s1226 + $0x24] sm:$0xf]
    %v1237 = vld [vmem:[%s1226 + $0x28] sm:$0xf]
    %v1238 = vld [vmem:[%s1226 + $0x2c] sm:$0xf]
    %v1239 = vld [vmem:[%s1226 + $0x30] sm:$0xf]
    %v1240 = vld [vmem:[%s1226 + $0x34] sm:$0xf]
    %v1241 = vld [vmem:[%s1226 + $0x38] sm:$0xf]
    %v1242 = vld [vmem:[%s1226 + $0x3c] sm:$0xf]
    %v1243 = vpack.c.b16 %v325, %v324
    %v1244 = vpack.c.b16 %v327, %v326
    %v1245 = vpack.c.b16 %v1117, %v328
    %v1265 = vunpack.c.l.b16 %v1227
    %v1266 = vunpack.c.l.b16 %v1228
    %v1267 = vunpack.c.l.b16 %v1229
    %v1268 = vunpack.c.l.b16 %v1230
    %v1269 = vunpack.c.l.b16 %v1231
    %v1270 = vunpack.c.l.b16 %v1232
    %v1271 = vunpack.c.l.b16 %v1233
    %v1272 = vunpack.c.l.b16 %v1234
    %v1273 = vunpack.c.l.b16 %v1235
    %v1274 = vunpack.c.l.b16 %v1236
    %v1275 = vunpack.c.l.b16 %v1237
    %v1276 = vunpack.c.l.b16 %v1238
    %v1277 = vunpack.c.l.b16 %v1239
    %v1278 = vunpack.c.l.b16 %v1240
    %v1279 = vunpack.c.l.b16 %v1241
    %v1280 = vunpack.c.l.b16 %v1242
    %v1281 = vpack.c.b16 %v1266, %v1265
    %v1282 = vpack.c.b16 %v1268, %v1267
    %v1283 = vpack.c.b16 %v1270, %v1269
    %v1284 = vpack.c.b16 %v1272, %v1271
    %v1285 = vpack.c.b16 %v1274, %v1273
    %v1286 = vpack.c.b16 %v1276, %v1275
    %v1287 = vpack.c.b16 %v1278, %v1277
    %v1288 = vpack.c.b16 %v1280, %v1279
    %1297 = vmatpush.bf16.msra.mxu0 %v1288
    %1298 = vmatpush.bf16.msra.mxu0 %v1287
    %1299 = vmatpush.bf16.msra.mxu0 %v1286
    %1300 = vmatpush.bf16.msra.mxu0 %v1285
    %1301 = vmatpush.bf16.msra.mxu0 %v1284
    %1302 = vmatpush.bf16.msra.mxu0 %v1283
    %1303 = vmatpush.bf16.msra.mxu0 %v1282
    %1304 = vmatpush.bf16.msra.mxu0 %v1281
    %1305 = vmatmul.bf16.gmra.mxu0 %v1243
    %v1306 = vpop.f32.mrf.mxu0
    %v1307 = vadd.f32 0.0, %v1306
    %v1308 = vpop.f32.mrf.mxu0
    %v1309 = vadd.f32 0.0, %v1308
    %1310 = vmatmul.bf16.gmra.mxu0 %v1244
    %v1311 = vpop.f32.mrf.mxu0
    %v1312 = vadd.f32 0.0, %v1311
    %v1313 = vpop.f32.mrf.mxu0
    %v1314 = vadd.f32 0.0, %v1313
    %1315 = vmatmul.bf16.gmra.mxu0 %v1245
    %v1316 = vpop.f32.mrf.mxu0
    %v1317 = vadd.f32 0.0, %v1316
    %v1318 = vpop.f32.mrf.mxu0
    %v1319 = vadd.f32 0.0, %v1318
    %1320 = vdwg.mxu0
    %v1321 = vadd.f32 %v1220, %v1307
    %v1322 = vadd.f32 %v1221, %v1309
    %v1323 = vadd.f32 %v1222, %v1312
    %v1324 = vadd.f32 %v1223, %v1314
    %v1325 = vadd.f32 %v1224, %v1317
    %v1326 = vadd.f32 %v1225, %v1319
    %v1327 = vpack.c.bf16 %v1321, %v1321
    %v1328 = vpack.c.bf16 %v1322, %v1322
    %v1329 = vpack.c.bf16 %v1323, %v1323
    %v1330 = vpack.c.bf16 %v1324, %v1324
    %v1331 = vpack.c.bf16 %v1325, %v1325
    %v1332 = vpack.c.bf16 %v1326, %v1326
    %v1339 = vrot.slane %v1327, 6
    %v1340 = vrot.slane %v1339, 4
    %v1341 = vrot.slane %v1328, 6
    %v1342 = vsel %vm244, %v1340, %v1341
    %v1343 = vrot.slane %v1341, 4
    %v1344 = vrot.slane %v1329, 6
    %v1345 = vsel %vm244, %v1343, %v1344
    %v1346 = vrot.slane %v1344, 4
    %v1347 = vrot.slane %v1330, 6
    %v1348 = vsel %vm244, %v1346, %v1347
    %v1349 = vrot.slane %v1347, 4
    %v1350 = vrot.slane %v1331, 6
    %v1351 = vsel %vm244, %v1349, %v1350
    %v1352 = vrot.slane %v1350, 4
    %v1353 = vrot.slane %v1332, 6
    %v1354 = vsel %vm244, %v1352, %v1353
    %v1355 = vrot.slane %v1353, 4
    %1363 = vst [vmem:[#allocation2] sm:$0xc] %v1339
    %1364 = vst [vmem:[#allocation2 + $0x4] sm:$0xf] %v1342
    %1365 = vst [vmem:[#allocation2 + $0x8] sm:$0xf] %v1345
    %1366 = vst [vmem:[#allocation2 + $0xc] sm:$0xf] %v1348
    %1367 = vst [vmem:[#allocation2 + $0x10] sm:$0xf] %v1351
    %1368 = vst [vmem:[#allocation2 + $0x14] sm:$0xf] %v1354
    %1369 = vst [vmem:[#allocation2 + $0x18] sm:$0x3] %v1355
    %1370 = vst [vmem:[#allocation2] sm:$0xc] 0
    %1371 = vst [vmem:[#allocation2 + $0xc] sm:$0x3] 0
    %1372 = vst [vmem:[#allocation2 + $0xc] sm:$0xc] 0
    %1373 = vst [vmem:[#allocation2 + $0x18] sm:$0x3] 0
    %v1374 = vld [vmem:[#allocation2] sm:$0xe]
    %v1375 = vld [vmem:[#allocation2 + $0x4] sm:$0xf]
    %v1376 = vld [vmem:[#allocation2 + $0x8] sm:$0xf]
    %v1377 = vld [vmem:[#allocation2 + $0xc] sm:$0xf]
    %v1378 = vld [vmem:[#allocation2 + $0x10] sm:$0xf]
    %v1379 = vld [vmem:[#allocation2 + $0x14] sm:$0xf]
    %v1380 = vld [vmem:[#allocation2 + $0x18] sm:$0x3]
    %v1381 = vld [vmem:[#allocation8] sm:$0xf]
    %v1382 = vld [vmem:[#allocation8 + $0x4] sm:$0xf]
    %v1383 = vld [vmem:[#allocation8 + $0x8] sm:$0xf]
    %v1384 = vld [vmem:[#allocation8 + $0xc] sm:$0xf]
    %v1385 = vld [vmem:[#allocation8 + $0x10] sm:$0xf]
    %v1386 = vld [vmem:[#allocation8 + $0x14] sm:$0xf]
    %v1387 = vld [vmem:[#allocation8 + $0x18] sm:$0xf]
    %v1388 = vld [vmem:[#allocation8 + $0x1c] sm:$0xf]
    %v1389 = vld [vmem:[#allocation8 + $0x20] sm:$0xf]
    %v1390 = vld [vmem:[#allocation8 + $0x24] sm:$0xf]
    %v1391 = vld [vmem:[#allocation8 + $0x28] sm:$0xf]
    %v1392 = vld [vmem:[#allocation8 + $0x2c] sm:$0xf]
    %v1393 = vld [vmem:[#allocation8 + $0x30] sm:$0xf]
    %v1394 = vld [vmem:[#allocation8 + $0x34] sm:$0xf]
    %v1395 = vld [vmem:[#allocation8 + $0x38] sm:$0xf]
    %v1396 = vld [vmem:[#allocation8 + $0x3c] sm:$0xf]
    %v1397 = vld [vmem:[#allocation2] sm:$0xc]
    %s1398 = scalar_lea.vmem [#allocation8], 64
    %v1399 = vld [vmem:[%s1398] sm:$0xf]
    %v1400 = vld [vmem:[%s1398 + $0x4] sm:$0xf]
    %v1401 = vld [vmem:[%s1398 + $0x8] sm:$0xf]
    %v1402 = vld [vmem:[%s1398 + $0xc] sm:$0xf]
    %v1403 = vld [vmem:[%s1398 + $0x10] sm:$0xf]
    %v1404 = vld [vmem:[%s1398 + $0x14] sm:$0xf]
    %v1405 = vld [vmem:[%s1398 + $0x18] sm:$0xf]
    %v1406 = vld [vmem:[%s1398 + $0x1c] sm:$0xf]
    %v1407 = vld [vmem:[%s1398 + $0x20] sm:$0xf]
    %v1408 = vld [vmem:[%s1398 + $0x24] sm:$0xf]
    %v1409 = vld [vmem:[%s1398 + $0x28] sm:$0xf]
    %v1410 = vld [vmem:[%s1398 + $0x2c] sm:$0xf]
    %v1411 = vld [vmem:[%s1398 + $0x30] sm:$0xf]
    %v1412 = vld [vmem:[%s1398 + $0x34] sm:$0xf]
    %v1413 = vld [vmem:[%s1398 + $0x38] sm:$0xf]
    %v1414 = vld [vmem:[%s1398 + $0x3c] sm:$0xf]
    %v1422 = vunpack.c.l.b16 %v1397
    %v1423 = vunpack.c.l.b16 %v1375
    %v1424 = vunpack.c.l.b16 %v1376
    %v1425 = vunpack.c.l.b16 %v1377
    %v1426 = vunpack.c.l.b16 %v1378
    %v1427 = vunpack.c.l.b16 %v1379
    %v1428 = vunpack.c.l.b16 %v1380
    %v1429 = vpack.c.b16 %v1423, %v1422
    %v1430 = vpack.c.b16 %v1425, %v1424
    %v1431 = vpack.c.b16 %v1427, %v1426
    %v1432 = vpack.c.b16 %v1428, %v1428
    %v1433 = vrot.slane %v1429, 2
    %v1434 = vrot.slane %v1430, 2
    %v1435 = vsel %vm147, %v1433, %v1434
    %v1436 = vrot.slane %v1431, 2
    %v1437 = vsel %vm147, %v1434, %v1436
    %v1438 = vrot.slane %v1432, 2
    %v1439 = vsel %vm147, %v1436, %v1438
    %v1459 = vunpack.c.l.b16 %v1399
    %v1460 = vunpack.c.l.b16 %v1400
    %v1461 = vunpack.c.l.b16 %v1401
    %v1462 = vunpack.c.l.b16 %v1402
    %v1463 = vunpack.c.l.b16 %v1403
    %v1464 = vunpack.c.l.b16 %v1404
    %v1465 = vunpack.c.l.b16 %v1405
    %v1466 = vunpack.c.l.b16 %v1406
    %v1467 = vunpack.c.l.b16 %v1407
    %v1468 = vunpack.c.l.b16 %v1408
    %v1469 = vunpack.c.l.b16 %v1409
    %v1470 = vunpack.c.l.b16 %v1410
    %v1471 = vunpack.c.l.b16 %v1411
    %v1472 = vunpack.c.l.b16 %v1412
    %v1473 = vunpack.c.l.b16 %v1413
    %v1474 = vunpack.c.l.b16 %v1414
    %v1475 = vpack.c.b16 %v1460, %v1459
    %v1476 = vpack.c.b16 %v1462, %v1461
    %v1477 = vpack.c.b16 %v1464, %v1463
    %v1478 = vpack.c.b16 %v1466, %v1465
    %v1479 = vpack.c.b16 %v1468, %v1467
    %v1480 = vpack.c.b16 %v1470, %v1469
    %v1481 = vpack.c.b16 %v1472, %v1471
    %v1482 = vpack.c.b16 %v1474, %v1473
    %1491 = vmatpush.bf16.msra.mxu0 %v1482
    %1492 = vmatpush.bf16.msra.mxu0 %v1481
    %1493 = vmatpush.bf16.msra.mxu0 %v1480
    %1494 = vmatpush.bf16.msra.mxu0 %v1479
    %1495 = vmatpush.bf16.msra.mxu0 %v1478
    %1496 = vmatpush.bf16.msra.mxu0 %v1477
    %1497 = vmatpush.bf16.msra.mxu0 %v1476
    %1498 = vmatpush.bf16.msra.mxu0 %v1475
    %1499 = vmatmul.bf16.gmra.mxu0 %v1435
    %v1500 = vpop.f32.mrf.mxu0
    %v1501 = vadd.f32 0.0, %v1500
    %v1502 = vpop.f32.mrf.mxu0
    %v1503 = vadd.f32 0.0, %v1502
    %1504 = vmatmul.bf16.gmra.mxu0 %v1437
    %v1505 = vpop.f32.mrf.mxu0
    %v1506 = vadd.f32 0.0, %v1505
    %v1507 = vpop.f32.mrf.mxu0
    %v1508 = vadd.f32 0.0, %v1507
    %1509 = vmatmul.bf16.gmra.mxu0 %v1439
    %v1510 = vpop.f32.mrf.mxu0
    %v1511 = vadd.f32 0.0, %v1510
    %v1512 = vpop.f32.mrf.mxu0
    %v1513 = vadd.f32 0.0, %v1512
    %1514 = vdwg.mxu0
    %v1516 = vunpack.c.l.b16 %v1374
    %v1517 = vpack.c.b16 %v1423, %v1516
    %v1519 = vshrl.u32 %v1517, 16
    %v1521 = vrot.slane %v1519, 1
    %v1522 = vshll.u32 %v1517, 16
    %v1524 = vrot.slane %v1522, 2
    %v1525 = vor.u32 %v1521, %v1524
    %v1527 = vshrl.u32 %v1430, 16
    %v1529 = vrot.slane %v1527, 1
    %v1530 = vshll.u32 %v1430, 16
    %v1532 = vrot.slane %v1530, 2
    %v1533 = vor.u32 %v1529, %v1532
    %v1534 = vsel %vm644, %v1525, %v1533
    %v1536 = vshrl.u32 %v1431, 16
    %v1538 = vrot.slane %v1536, 1
    %v1539 = vshll.u32 %v1431, 16
    %v1541 = vrot.slane %v1539, 2
    %v1542 = vor.u32 %v1538, %v1541
    %v1543 = vsel %vm644, %v1533, %v1542
    %v1545 = vshrl.u32 %v1432, 16
    %v1547 = vrot.slane %v1545, 1
    %v1548 = vshll.u32 %v1432, 16
    %v1550 = vrot.slane %v1548, 2
    %v1551 = vor.u32 %v1547, %v1550
    %v1552 = vsel %vm644, %v1542, %v1551
    %v1572 = vunpack.c.l.b16 %v1381
    %v1573 = vunpack.c.l.b16 %v1382
    %v1574 = vunpack.c.l.b16 %v1383
    %v1575 = vunpack.c.l.b16 %v1384
    %v1576 = vunpack.c.l.b16 %v1385
    %v1577 = vunpack.c.l.b16 %v1386
    %v1578 = vunpack.c.l.b16 %v1387
    %v1579 = vunpack.c.l.b16 %v1388
    %v1580 = vunpack.c.l.b16 %v1389
    %v1581 = vunpack.c.l.b16 %v1390
    %v1582 = vunpack.c.l.b16 %v1391
    %v1583 = vunpack.c.l.b16 %v1392
    %v1584 = vunpack.c.l.b16 %v1393
    %v1585 = vunpack.c.l.b16 %v1394
    %v1586 = vunpack.c.l.b16 %v1395
    %v1587 = vunpack.c.l.b16 %v1396
    %v1588 = vpack.c.b16 %v1573, %v1572
    %v1589 = vpack.c.b16 %v1575, %v1574
    %v1590 = vpack.c.b16 %v1577, %v1576
    %v1591 = vpack.c.b16 %v1579, %v1578
    %v1592 = vpack.c.b16 %v1581, %v1580
    %v1593 = vpack.c.b16 %v1583, %v1582
    %v1594 = vpack.c.b16 %v1585, %v1584
    %v1595 = vpack.c.b16 %v1587, %v1586
    %1604 = vmatpush.bf16.msra.mxu0 %v1595
    %1605 = vmatpush.bf16.msra.mxu0 %v1594
    %1606 = vmatpush.bf16.msra.mxu0 %v1593
    %1607 = vmatpush.bf16.msra.mxu0 %v1592
    %1608 = vmatpush.bf16.msra.mxu0 %v1591
    %1609 = vmatpush.bf16.msra.mxu0 %v1590
    %1610 = vmatpush.bf16.msra.mxu0 %v1589
    %1611 = vmatpush.bf16.msra.mxu0 %v1588
    %1612 = vmatmul.bf16.gmra.mxu0 %v1534
    %v1613 = vpop.f32.mrf.mxu0
    %v1614 = vadd.f32 %v1501, %v1613
    %v1615 = vpop.f32.mrf.mxu0
    %v1616 = vadd.f32 %v1503, %v1615
    %1617 = vmatmul.bf16.gmra.mxu0 %v1543
    %v1618 = vpop.f32.mrf.mxu0
    %v1619 = vadd.f32 %v1506, %v1618
    %v1620 = vpop.f32.mrf.mxu0
    %v1621 = vadd.f32 %v1508, %v1620
    %1622 = vmatmul.bf16.gmra.mxu0 %v1552
    %v1623 = vpop.f32.mrf.mxu0
    %v1624 = vadd.f32 %v1511, %v1623
    %v1625 = vpop.f32.mrf.mxu0
    %v1626 = vadd.f32 %v1513, %v1625
    %1627 = vdwg.mxu0
    %v1628 = vld [vmem:[#allocation2 + $0x18] sm:$0x7]
    %s1629 = scalar_lea.vmem [#allocation8], 128
    %v1630 = vld [vmem:[%s1629] sm:$0xf]
    %v1631 = vld [vmem:[%s1629 + $0x4] sm:$0xf]
    %v1632 = vld [vmem:[%s1629 + $0x8] sm:$0xf]
    %v1633 = vld [vmem:[%s1629 + $0xc] sm:$0xf]
    %v1634 = vld [vmem:[%s1629 + $0x10] sm:$0xf]
    %v1635 = vld [vmem:[%s1629 + $0x14] sm:$0xf]
    %v1636 = vld [vmem:[%s1629 + $0x18] sm:$0xf]
    %v1637 = vld [vmem:[%s1629 + $0x1c] sm:$0xf]
    %v1638 = vld [vmem:[%s1629 + $0x20] sm:$0xf]
    %v1639 = vld [vmem:[%s1629 + $0x24] sm:$0xf]
    %v1640 = vld [vmem:[%s1629 + $0x28] sm:$0xf]
    %v1641 = vld [vmem:[%s1629 + $0x2c] sm:$0xf]
    %v1642 = vld [vmem:[%s1629 + $0x30] sm:$0xf]
    %v1643 = vld [vmem:[%s1629 + $0x34] sm:$0xf]
    %v1644 = vld [vmem:[%s1629 + $0x38] sm:$0xf]
    %v1645 = vld [vmem:[%s1629 + $0x3c] sm:$0xf]
    %v1647 = vunpack.c.l.b16 %v1628
    %v1648 = vpack.c.b16 %v1647, %v1647
    %v1650 = vshrl.u32 %v1429, 16
    %v1652 = vrot.slane %v1650, 2
    %v1653 = vshll.u32 %v1429, 16
    %v1655 = vrot.slane %v1653, 3
    %v1656 = vor.u32 %v1652, %v1655
    %v1657 = vrot.slane %v1527, 2
    %v1658 = vrot.slane %v1530, 3
    %v1659 = vor.u32 %v1657, %v1658
    %v1660 = vsel %vm881, %v1656, %v1659
    %v1661 = vrot.slane %v1536, 2
    %v1662 = vrot.slane %v1539, 3
    %v1663 = vor.u32 %v1661, %v1662
    %v1664 = vsel %vm881, %v1659, %v1663
    %v1666 = vshrl.u32 %v1648, 16
    %v1668 = vrot.slane %v1666, 2
    %v1669 = vshll.u32 %v1648, 16
    %v1671 = vrot.slane %v1669, 3
    %v1672 = vor.u32 %v1668, %v1671
    %v1673 = vsel %vm881, %v1663, %v1672
    %v1693 = vunpack.c.l.b16 %v1630
    %v1694 = vunpack.c.l.b16 %v1631
    %v1695 = vunpack.c.l.b16 %v1632
    %v1696 = vunpack.c.l.b16 %v1633
    %v1697 = vunpack.c.l.b16 %v1634
    %v1698 = vunpack.c.l.b16 %v1635
    %v1699 = vunpack.c.l.b16 %v1636
    %v1700 = vunpack.c.l.b16 %v1637
    %v1701 = vunpack.c.l.b16 %v1638
    %v1702 = vunpack.c.l.b16 %v1639
    %v1703 = vunpack.c.l.b16 %v1640
    %v1704 = vunpack.c.l.b16 %v1641
    %v1705 = vunpack.c.l.b16 %v1642
    %v1706 = vunpack.c.l.b16 %v1643
    %v1707 = vunpack.c.l.b16 %v1644
    %v1708 = vunpack.c.l.b16 %v1645
    %v1709 = vpack.c.b16 %v1694, %v1693
    %v1710 = vpack.c.b16 %v1696, %v1695
    %v1711 = vpack.c.b16 %v1698, %v1697
    %v1712 = vpack.c.b16 %v1700, %v1699
    %v1713 = vpack.c.b16 %v1702, %v1701
    %v1714 = vpack.c.b16 %v1704, %v1703
    %v1715 = vpack.c.b16 %v1706, %v1705
    %v1716 = vpack.c.b16 %v1708, %v1707
    %1725 = vmatpush.bf16.msra.mxu0 %v1716
    %1726 = vmatpush.bf16.msra.mxu0 %v1715
    %1727 = vmatpush.bf16.msra.mxu0 %v1714
    %1728 = vmatpush.bf16.msra.mxu0 %v1713
    %1729 = vmatpush.bf16.msra.mxu0 %v1712
    %1730 = vmatpush.bf16.msra.mxu0 %v1711
    %1731 = vmatpush.bf16.msra.mxu0 %v1710
    %1732 = vmatpush.bf16.msra.mxu0 %v1709
    %1733 = vmatmul.bf16.gmra.mxu0 %v1660
    %v1734 = vpop.f32.mrf.mxu0
    %v1735 = vadd.f32 0.0, %v1734
    %v1736 = vpop.f32.mrf.mxu0
    %v1737 = vadd.f32 0.0, %v1736
    %1738 = vmatmul.bf16.gmra.mxu0 %v1664
    %v1739 = vpop.f32.mrf.mxu0
    %v1740 = vadd.f32 0.0, %v1739
    %v1741 = vpop.f32.mrf.mxu0
    %v1742 = vadd.f32 0.0, %v1741
    %1743 = vmatmul.bf16.gmra.mxu0 %v1673
    %v1744 = vpop.f32.mrf.mxu0
    %v1745 = vadd.f32 0.0, %v1744
    %v1746 = vpop.f32.mrf.mxu0
    %v1747 = vadd.f32 0.0, %v1746
    %1748 = vdwg.mxu0
    %v1749 = vadd.f32 %v1614, %v1735
    %v1750 = vadd.f32 %v1616, %v1737
    %v1751 = vadd.f32 %v1619, %v1740
    %v1752 = vadd.f32 %v1621, %v1742
    %v1753 = vadd.f32 %v1624, %v1745
    %v1754 = vadd.f32 %v1626, %v1747
    %v1755 = vld [vmem:[#allocation2] sm:$0x8]
    %s1756 = scalar_lea.vmem [#allocation8], 192
    %v1757 = vld [vmem:[%s1756] sm:$0xf]
    %v1758 = vld [vmem:[%s1756 + $0x4] sm:$0xf]
    %v1759 = vld [vmem:[%s1756 + $0x8] sm:$0xf]
    %v1760 = vld [vmem:[%s1756 + $0xc] sm:$0xf]
    %v1761 = vld [vmem:[%s1756 + $0x10] sm:$0xf]
    %v1762 = vld [vmem:[%s1756 + $0x14] sm:$0xf]
    %v1763 = vld [vmem:[%s1756 + $0x18] sm:$0xf]
    %v1764 = vld [vmem:[%s1756 + $0x1c] sm:$0xf]
    %v1765 = vld [vmem:[%s1756 + $0x20] sm:$0xf]
    %v1766 = vld [vmem:[%s1756 + $0x24] sm:$0xf]
    %v1767 = vld [vmem:[%s1756 + $0x28] sm:$0xf]
    %v1768 = vld [vmem:[%s1756 + $0x2c] sm:$0xf]
    %v1769 = vld [vmem:[%s1756 + $0x30] sm:$0xf]
    %v1770 = vld [vmem:[%s1756 + $0x34] sm:$0xf]
    %v1771 = vld [vmem:[%s1756 + $0x38] sm:$0xf]
    %v1772 = vld [vmem:[%s1756 + $0x3c] sm:$0xf]
    %v1774 = vunpack.c.l.b16 %v1755
    %v1775 = vpack.c.b16 %v1423, %v1774
    %v1776 = vrot.slane %v1775, 3
    %v1777 = vrot.slane %v1430, 3
    %v1778 = vsel %vm1009, %v1776, %v1777
    %v1779 = vrot.slane %v1431, 3
    %v1780 = vsel %vm1009, %v1777, %v1779
    %v1781 = vrot.slane %v1648, 3
    %v1782 = vsel %vm1009, %v1779, %v1781
    %v1802 = vunpack.c.l.b16 %v1757
    %v1803 = vunpack.c.l.b16 %v1758
    %v1804 = vunpack.c.l.b16 %v1759
    %v1805 = vunpack.c.l.b16 %v1760
    %v1806 = vunpack.c.l.b16 %v1761
    %v1807 = vunpack.c.l.b16 %v1762
    %v1808 = vunpack.c.l.b16 %v1763
    %v1809 = vunpack.c.l.b16 %v1764
    %v1810 = vunpack.c.l.b16 %v1765
    %v1811 = vunpack.c.l.b16 %v1766
    %v1812 = vunpack.c.l.b16 %v1767
    %v1813 = vunpack.c.l.b16 %v1768
    %v1814 = vunpack.c.l.b16 %v1769
    %v1815 = vunpack.c.l.b16 %v1770
    %v1816 = vunpack.c.l.b16 %v1771
    %v1817 = vunpack.c.l.b16 %v1772
    %v1818 = vpack.c.b16 %v1803, %v1802
    %v1819 = vpack.c.b16 %v1805, %v1804
    %v1820 = vpack.c.b16 %v1807, %v1806
    %v1821 = vpack.c.b16 %v1809, %v1808
    %v1822 = vpack.c.b16 %v1811, %v1810
    %v1823 = vpack.c.b16 %v1813, %v1812
    %v1824 = vpack.c.b16 %v1815, %v1814
    %v1825 = vpack.c.b16 %v1817, %v1816
    %1834 = vmatpush.bf16.msra.mxu0 %v1825
    %1835 = vmatpush.bf16.msra.mxu0 %v1824
    %1836 = vmatpush.bf16.msra.mxu0 %v1823
    %1837 = vmatpush.bf16.msra.mxu0 %v1822
    %1838 = vmatpush.bf16.msra.mxu0 %v1821
    %1839 = vmatpush.bf16.msra.mxu0 %v1820
    %1840 = vmatpush.bf16.msra.mxu0 %v1819
    %1841 = vmatpush.bf16.msra.mxu0 %v1818
    %1842 = vmatmul.bf16.gmra.mxu0 %v1778
    %v1843 = vpop.f32.mrf.mxu0
    %v1844 = vadd.f32 0.0, %v1843
    %v1845 = vpop.f32.mrf.mxu0
    %v1846 = vadd.f32 0.0, %v1845
    %1847 = vmatmul.bf16.gmra.mxu0 %v1780
    %v1848 = vpop.f32.mrf.mxu0
    %v1849 = vadd.f32 0.0, %v1848
    %v1850 = vpop.f32.mrf.mxu0
    %v1851 = vadd.f32 0.0, %v1850
    %1852 = vmatmul.bf16.gmra.mxu0 %v1782
    %v1853 = vpop.f32.mrf.mxu0
    %v1854 = vadd.f32 0.0, %v1853
    %v1855 = vpop.f32.mrf.mxu0
    %v1856 = vadd.f32 0.0, %v1855
    %1857 = vdwg.mxu0
    %v1858 = vadd.f32 %v1749, %v1844
    %v1859 = vadd.f32 %v1750, %v1846
    %v1860 = vadd.f32 %v1751, %v1849
    %v1861 = vadd.f32 %v1752, %v1851
    %v1862 = vadd.f32 %v1753, %v1854
    %v1863 = vadd.f32 %v1754, %v1856
    %v1864 = vpack.c.bf16 %v1858, %v1858
    %v1865 = vpack.c.bf16 %v1859, %v1859
    %v1866 = vpack.c.bf16 %v1860, %v1860
    %v1867 = vpack.c.bf16 %v1861, %v1861
    %v1868 = vpack.c.bf16 %v1862, %v1862
    %v1869 = vpack.c.bf16 %v1863, %v1863
    %v1876 = vrot.slane %v1864, 6
    %v1877 = vrot.slane %v1876, 4
    %v1878 = vrot.slane %v1865, 6
    %v1879 = vsel %vm244, %v1877, %v1878
    %v1880 = vrot.slane %v1878, 4
    %v1881 = vrot.slane %v1866, 6
    %v1882 = vsel %vm244, %v1880, %v1881
    %v1883 = vrot.slane %v1881, 4
    %v1884 = vrot.slane %v1867, 6
    %v1885 = vsel %vm244, %v1883, %v1884
    %v1886 = vrot.slane %v1884, 4
    %v1887 = vrot.slane %v1868, 6
    %v1888 = vsel %vm244, %v1886, %v1887
    %v1889 = vrot.slane %v1887, 4
    %v1890 = vrot.slane %v1869, 6
    %v1891 = vsel %vm244, %v1889, %v1890
    %v1892 = vrot.slane %v1890, 4
    %1900 = vst [vmem:[#allocation3] sm:$0xc] %v1876
    %1901 = vst [vmem:[#allocation3 + $0x4] sm:$0xf] %v1879
    %1902 = vst [vmem:[#allocation3 + $0x8] sm:$0xf] %v1882
    %1903 = vst [vmem:[#allocation3 + $0xc] sm:$0xf] %v1885
    %1904 = vst [vmem:[#allocation3 + $0x10] sm:$0xf] %v1888
    %1905 = vst [vmem:[#allocation3 + $0x14] sm:$0xf] %v1891
    %1906 = vst [vmem:[#allocation3 + $0x18] sm:$0x3] %v1892
    %1907 = vst [vmem:[#allocation3] sm:$0xc] 0
    %1908 = vst [vmem:[#allocation3 + $0xc] sm:$0x3] 0
    %1909 = vst [vmem:[#allocation3 + $0xc] sm:$0xc] 0
    %1910 = vst [vmem:[#allocation3 + $0x18] sm:$0x3] 0
    %v1911 = vld [vmem:[#allocation3 + $0x4] sm:$0xf]
    %v1912 = vld [vmem:[#allocation3 + $0x8] sm:$0xf]
    %v1913 = vld [vmem:[#allocation9] sm:$0xf]
    %v1914 = vld [vmem:[#allocation9 + $0x4] sm:$0xf]
    %v1915 = vld [vmem:[#allocation9 + $0x8] sm:$0xf]
    %v1916 = vld [vmem:[#allocation9 + $0xc] sm:$0xf]
    %v1917 = vld [vmem:[#allocation9 + $0x10] sm:$0xf]
    %v1918 = vld [vmem:[#allocation9 + $0x14] sm:$0xf]
    %v1919 = vld [vmem:[#allocation9 + $0x18] sm:$0xf]
    %v1920 = vld [vmem:[#allocation9 + $0x1c] sm:$0xf]
    %v1921 = vld [vmem:[#allocation9 + $0x20] sm:$0xf]
    %v1922 = vld [vmem:[#allocation9 + $0x24] sm:$0xf]
    %v1923 = vld [vmem:[#allocation9 + $0x28] sm:$0xf]
    %v1924 = vld [vmem:[#allocation9 + $0x2c] sm:$0xf]
    %v1925 = vld [vmem:[#allocation9 + $0x30] sm:$0xf]
    %v1926 = vld [vmem:[#allocation9 + $0x34] sm:$0xf]
    %v1927 = vld [vmem:[#allocation9 + $0x38] sm:$0xf]
    %v1928 = vld [vmem:[#allocation9 + $0x3c] sm:$0xf]
    %v1929 = vld [vmem:[#allocation3 + $0xc] sm:$0x1]
    %s1930 = scalar_lea.vmem [#allocation9], 64
    %v1931 = vld [vmem:[%s1930] sm:$0xf]
    %v1932 = vld [vmem:[%s1930 + $0x4] sm:$0xf]
    %v1933 = vld [vmem:[%s1930 + $0x8] sm:$0xf]
    %v1934 = vld [vmem:[%s1930 + $0xc] sm:$0xf]
    %v1935 = vld [vmem:[%s1930 + $0x10] sm:$0xf]
    %v1936 = vld [vmem:[%s1930 + $0x14] sm:$0xf]
    %v1937 = vld [vmem:[%s1930 + $0x18] sm:$0xf]
    %v1938 = vld [vmem:[%s1930 + $0x1c] sm:$0xf]
    %v1939 = vld [vmem:[%s1930 + $0x20] sm:$0xf]
    %v1940 = vld [vmem:[%s1930 + $0x24] sm:$0xf]
    %v1941 = vld [vmem:[%s1930 + $0x28] sm:$0xf]
    %v1942 = vld [vmem:[%s1930 + $0x2c] sm:$0xf]
    %v1943 = vld [vmem:[%s1930 + $0x30] sm:$0xf]
    %v1944 = vld [vmem:[%s1930 + $0x34] sm:$0xf]
    %v1945 = vld [vmem:[%s1930 + $0x38] sm:$0xf]
    %v1946 = vld [vmem:[%s1930 + $0x3c] sm:$0xf]
    %v1950 = vunpack.c.l.b16 %v1911
    %v1951 = vunpack.c.l.b16 %v1912
    %v1952 = vunpack.c.l.b16 %v1929
    %v1953 = vpack.c.b16 %v1951, %v1950
    %v1954 = vpack.c.b16 %v1952, %v1952
    %v1956 = vshrl.u32 %v1953, 16
    %v1958 = vshll.u32 %v1953, 16
    %v1960 = vrot.slane %v1958, 1
    %v1961 = vor.u32 %v1956, %v1960
    %v1963 = vshll.u32 %v1954, 16
    %v1965 = vrot.slane %v1963, 1
    %v1966 = vsel %vm334, %v1961, %v1965
    %v1984 = vunpack.c.l.b16 %v1931
    %v1985 = vunpack.c.l.b16 %v1932
    %v1986 = vunpack.c.l.b16 %v1933
    %v1987 = vunpack.c.l.b16 %v1934
    %v1988 = vunpack.c.l.b16 %v1935
    %v1989 = vunpack.c.l.b16 %v1936
    %v1990 = vunpack.c.l.b16 %v1937
    %v1991 = vunpack.c.l.b16 %v1938
    %v1992 = vunpack.c.l.b16 %v1939
    %v1993 = vunpack.c.l.b16 %v1940
    %v1994 = vunpack.c.l.b16 %v1941
    %v1995 = vunpack.c.l.b16 %v1942
    %v1996 = vunpack.c.l.b16 %v1943
    %v1997 = vunpack.c.l.b16 %v1944
    %v1998 = vunpack.c.l.b16 %v1945
    %v1999 = vunpack.c.l.b16 %v1946
    %v2000 = vpack.c.b16 %v1985, %v1984
    %v2001 = vpack.c.b16 %v1987, %v1986
    %v2002 = vpack.c.b16 %v1989, %v1988
    %v2003 = vpack.c.b16 %v1991, %v1990
    %v2004 = vpack.c.b16 %v1993, %v1992
    %v2005 = vpack.c.b16 %v1995, %v1994
    %v2006 = vpack.c.b16 %v1997, %v1996
    %v2007 = vpack.c.b16 %v1999, %v1998
    %2016 = vmatpush.bf16.msra.mxu0 %v2007
    %2017 = vmatpush.bf16.msra.mxu0 %v2006
    %2018 = vmatpush.bf16.msra.mxu0 %v2005
    %2019 = vmatpush.bf16.msra.mxu0 %v2004
    %2020 = vmatpush.bf16.msra.mxu0 %v2003
    %2021 = vmatpush.bf16.msra.mxu0 %v2002
    %2022 = vmatpush.bf16.msra.mxu0 %v2001
    %2023 = vmatpush.bf16.msra.mxu0 %v2000
    %2024 = vmatmul.bf16.gmra.mxu0 %v1966
    %v2025 = vpop.f32.mrf.mxu0
    %v2026 = vadd.f32 0.0, %v2025
    %v2027 = vpop.f32.mrf.mxu0
    %v2028 = vadd.f32 0.0, %v2027
    %2029 = vdwg.mxu0
    %v2047 = vunpack.c.l.b16 %v1913
    %v2048 = vunpack.c.l.b16 %v1914
    %v2049 = vunpack.c.l.b16 %v1915
    %v2050 = vunpack.c.l.b16 %v1916
    %v2051 = vunpack.c.l.b16 %v1917
    %v2052 = vunpack.c.l.b16 %v1918
    %v2053 = vunpack.c.l.b16 %v1919
    %v2054 = vunpack.c.l.b16 %v1920
    %v2055 = vunpack.c.l.b16 %v1921
    %v2056 = vunpack.c.l.b16 %v1922
    %v2057 = vunpack.c.l.b16 %v1923
    %v2058 = vunpack.c.l.b16 %v1924
    %v2059 = vunpack.c.l.b16 %v1925
    %v2060 = vunpack.c.l.b16 %v1926
    %v2061 = vunpack.c.l.b16 %v1927
    %v2062 = vunpack.c.l.b16 %v1928
    %v2063 = vpack.c.b16 %v2048, %v2047
    %v2064 = vpack.c.b16 %v2050, %v2049
    %v2065 = vpack.c.b16 %v2052, %v2051
    %v2066 = vpack.c.b16 %v2054, %v2053
    %v2067 = vpack.c.b16 %v2056, %v2055
    %v2068 = vpack.c.b16 %v2058, %v2057
    %v2069 = vpack.c.b16 %v2060, %v2059
    %v2070 = vpack.c.b16 %v2062, %v2061
    %2079 = vmatpush.bf16.msra.mxu0 %v2070
    %2080 = vmatpush.bf16.msra.mxu0 %v2069
    %2081 = vmatpush.bf16.msra.mxu0 %v2068
    %2082 = vmatpush.bf16.msra.mxu0 %v2067
    %2083 = vmatpush.bf16.msra.mxu0 %v2066
    %2084 = vmatpush.bf16.msra.mxu0 %v2065
    %2085 = vmatpush.bf16.msra.mxu0 %v2064
    %2086 = vmatpush.bf16.msra.mxu0 %v2063
    %2087 = vmatmul.bf16.gmra.mxu0 %v1953
    %v2088 = vpop.f32.mrf.mxu0
    %v2089 = vadd.f32 %v2026, %v2088
    %v2090 = vpop.f32.mrf.mxu0
    %v2091 = vadd.f32 %v2028, %v2090
    %2092 = vdwg.mxu0
    %v2093 = vld [vmem:[%s0] sm:$0xf]
    %v2094 = vld [vmem:[%s0 + $0x4] sm:$0xf]
    %v2095 = vld [vmem:[%s5] sm:$0xf]
    %v2096 = vld [vmem:[%s5 + $0x4] sm:$0xf]
    %v2097 = vld [vmem:[%s5 + $0x8] sm:$0xf]
    %v2098 = vld [vmem:[%s5 + $0xc] sm:$0xf]
    %v2099 = vld [vmem:[%s5 + $0x10] sm:$0xf]
    %v2100 = vld [vmem:[%s5 + $0x14] sm:$0xf]
    %v2101 = vld [vmem:[%s5 + $0x18] sm:$0xf]
    %v2102 = vld [vmem:[%s5 + $0x1c] sm:$0xf]
    %v2103 = vld [vmem:[%s5 + $0x20] sm:$0xf]
    %v2104 = vld [vmem:[%s5 + $0x24] sm:$0xf]
    %v2105 = vld [vmem:[%s5 + $0x28] sm:$0xf]
    %v2106 = vld [vmem:[%s5 + $0x2c] sm:$0xf]
    %v2107 = vld [vmem:[%s5 + $0x30] sm:$0xf]
    %v2108 = vld [vmem:[%s5 + $0x34] sm:$0xf]
    %v2109 = vld [vmem:[%s5 + $0x38] sm:$0xf]
    %v2110 = vld [vmem:[%s5 + $0x3c] sm:$0xf]
    %v2113 = vunpack.c.l.b16 %v2093
    %v2114 = vunpack.c.l.b16 %v2094
    %v2115 = vpack.c.b16 %v2114, %v2113
    %v2133 = vunpack.c.l.b16 %v2095
    %v2134 = vunpack.c.l.b16 %v2096
    %v2135 = vunpack.c.l.b16 %v2097
    %v2136 = vunpack.c.l.b16 %v2098
    %v2137 = vunpack.c.l.b16 %v2099
    %v2138 = vunpack.c.l.b16 %v2100
    %v2139 = vunpack.c.l.b16 %v2101
    %v2140 = vunpack.c.l.b16 %v2102
    %v2141 = vunpack.c.l.b16 %v2103
    %v2142 = vunpack.c.l.b16 %v2104
    %v2143 = vunpack.c.l.b16 %v2105
    %v2144 = vunpack.c.l.b16 %v2106
    %v2145 = vunpack.c.l.b16 %v2107
    %v2146 = vunpack.c.l.b16 %v2108
    %v2147 = vunpack.c.l.b16 %v2109
    %v2148 = vunpack.c.l.b16 %v2110
    %v2149 = vpack.c.b16 %v2134, %v2133
    %v2150 = vpack.c.b16 %v2136, %v2135
    %v2151 = vpack.c.b16 %v2138, %v2137
    %v2152 = vpack.c.b16 %v2140, %v2139
    %v2153 = vpack.c.b16 %v2142, %v2141
    %v2154 = vpack.c.b16 %v2144, %v2143
    %v2155 = vpack.c.b16 %v2146, %v2145
    %v2156 = vpack.c.b16 %v2148, %v2147
    %2165 = vmatpush.bf16.msra.mxu0 %v2156
    %2166 = vmatpush.bf16.msra.mxu0 %v2155
    %2167 = vmatpush.bf16.msra.mxu0 %v2154
    %2168 = vmatpush.bf16.msra.mxu0 %v2153
    %2169 = vmatpush.bf16.msra.mxu0 %v2152
    %2170 = vmatpush.bf16.msra.mxu0 %v2151
    %2171 = vmatpush.bf16.msra.mxu0 %v2150
    %2172 = vmatpush.bf16.msra.mxu0 %v2149
    %2173 = vmatmul.bf16.gmra.mxu0 %v2115
    %v2174 = vpop.f32.mrf.mxu0
    %v2175 = vadd.f32 0.0, %v2174
    %v2176 = vpop.f32.mrf.mxu0
    %v2177 = vadd.f32 0.0, %v2176
    %2178 = vdwg.mxu0
    %v2179 = vld [vmem:[%s6] sm:$0x1]
    %v2181 = vperm.slane %v2179, 0
    %v2183 = vmul.f32 %v2175, %v2181
    %v2184 = vmul.f32 %v2177, %v2181
    %v2185 = vld [vmem:[%s7] sm:$0x1]
    %v2187 = vperm.slane %v2185, 0
    %v2189 = vadd.f32 %v2183, %v2187
    %v2190 = vadd.f32 %v2184, %v2187
    %v2191 = vmax.f32 %v2189, 0.0
    %v2192 = vmax.f32 %v2190, 0.0
    %v2193 = vadd.f32 %v2089, %v2191
    %v2194 = vadd.f32 %v2091, %v2192
    %2195 = vst [vmem:[%s8] sm:$0xff] %v2193
    %2196 = vst [vmem:[%s8 + $0x8] sm:$0xff] %v2194
    %v2197 = vld [vmem:[#allocation3 + $0x10] sm:$0xf]
    %v2198 = vld [vmem:[#allocation3 + $0x14] sm:$0xf]
    %v2199 = vld [vmem:[#allocation9] sm:$0xf]
    %v2200 = vld [vmem:[#allocation9 + $0x4] sm:$0xf]
    %v2201 = vld [vmem:[#allocation9 + $0x8] sm:$0xf]
    %v2202 = vld [vmem:[#allocation9 + $0xc] sm:$0xf]
    %v2203 = vld [vmem:[#allocation9 + $0x10] sm:$0xf]
    %v2204 = vld [vmem:[#allocation9 + $0x14] sm:$0xf]
    %v2205 = vld [vmem:[#allocation9 + $0x18] sm:$0xf]
    %v2206 = vld [vmem:[#allocation9 + $0x1c] sm:$0xf]
    %v2207 = vld [vmem:[#allocation9 + $0x20] sm:$0xf]
    %v2208 = vld [vmem:[#allocation9 + $0x24] sm:$0xf]
    %v2209 = vld [vmem:[#allocation9 + $0x28] sm:$0xf]
    %v2210 = vld [vmem:[#allocation9 + $0x2c] sm:$0xf]
    %v2211 = vld [vmem:[#allocation9 + $0x30] sm:$0xf]
    %v2212 = vld [vmem:[#allocation9 + $0x34] sm:$0xf]
    %v2213 = vld [vmem:[#allocation9 + $0x38] sm:$0xf]
    %v2214 = vld [vmem:[#allocation9 + $0x3c] sm:$0xf]
    %v2215 = vld [vmem:[#allocation3 + $0x18] sm:$0x1]
    %v2216 = vld [vmem:[%s1930] sm:$0xf]
    %v2217 = vld [vmem:[%s1930 + $0x4] sm:$0xf]
    %v2218 = vld [vmem:[%s1930 + $0x8] sm:$0xf]
    %v2219 = vld [vmem:[%s1930 + $0xc] sm:$0xf]
    %v2220 = vld [vmem:[%s1930 + $0x10] sm:$0xf]
    %v2221 = vld [vmem:[%s1930 + $0x14] sm:$0xf]
    %v2222 = vld [vmem:[%s1930 + $0x18] sm:$0xf]
    %v2223 = vld [vmem:[%s1930 + $0x1c] sm:$0xf]
    %v2224 = vld [vmem:[%s1930 + $0x20] sm:$0xf]
    %v2225 = vld [vmem:[%s1930 + $0x24] sm:$0xf]
    %v2226 = vld [vmem:[%s1930 + $0x28] sm:$0xf]
    %v2227 = vld [vmem:[%s1930 + $0x2c] sm:$0xf]
    %v2228 = vld [vmem:[%s1930 + $0x30] sm:$0xf]
    %v2229 = vld [vmem:[%s1930 + $0x34] sm:$0xf]
    %v2230 = vld [vmem:[%s1930 + $0x38] sm:$0xf]
    %v2231 = vld [vmem:[%s1930 + $0x3c] sm:$0xf]
    %v2235 = vunpack.c.l.b16 %v2197
    %v2236 = vunpack.c.l.b16 %v2198
    %v2237 = vunpack.c.l.b16 %v2215
    %v2238 = vpack.c.b16 %v2236, %v2235
    %v2239 = vpack.c.b16 %v2237, %v2237
    %v2241 = vshrl.u32 %v2238, 16
    %v2243 = vshll.u32 %v2238, 16
    %v2245 = vrot.slane %v2243, 1
    %v2246 = vor.u32 %v2241, %v2245
    %v2248 = vshll.u32 %v2239, 16
    %v2250 = vrot.slane %v2248, 1
    %v2251 = vsel %vm334, %v2246, %v2250
    %v2269 = vunpack.c.l.b16 %v2216
    %v2270 = vunpack.c.l.b16 %v2217
    %v2271 = vunpack.c.l.b16 %v2218
    %v2272 = vunpack.c.l.b16 %v2219
    %v2273 = vunpack.c.l.b16 %v2220
    %v2274 = vunpack.c.l.b16 %v2221
    %v2275 = vunpack.c.l.b16 %v2222
    %v2276 = vunpack.c.l.b16 %v2223
    %v2277 = vunpack.c.l.b16 %v2224
    %v2278 = vunpack.c.l.b16 %v2225
    %v2279 = vunpack.c.l.b16 %v2226
    %v2280 = vunpack.c.l.b16 %v2227
    %v2281 = vunpack.c.l.b16 %v2228
    %v2282 = vunpack.c.l.b16 %v2229
    %v2283 = vunpack.c.l.b16 %v2230
    %v2284 = vunpack.c.l.b16 %v2231
    %v2285 = vpack.c.b16 %v2270, %v2269
    %v2286 = vpack.c.b16 %v2272, %v2271
    %v2287 = vpack.c.b16 %v2274, %v2273
    %v2288 = vpack.c.b16 %v2276, %v2275
    %v2289 = vpack.c.b16 %v2278, %v2277
    %v2290 = vpack.c.b16 %v2280, %v2279
    %v2291 = vpack.c.b16 %v2282, %v2281
    %v2292 = vpack.c.b16 %v2284, %v2283
    %2301 = vmatpush.bf16.msra.mxu0 %v2292
    %2302 = vmatpush.bf16.msra.mxu0 %v2291
    %2303 = vmatpush.bf16.msra.mxu0 %v2290
    %2304 = vmatpush.bf16.msra.mxu0 %v2289
    %2305 = vmatpush.bf16.msra.mxu0 %v2288
    %2306 = vmatpush.bf16.msra.mxu0 %v2287
    %2307 = vmatpush.bf16.msra.mxu0 %v2286
    %2308 = vmatpush.bf16.msra.mxu0 %v2285
    %2309 = vmatmul.bf16.gmra.mxu0 %v2251
    %v2310 = vpop.f32.mrf.mxu0
    %v2311 = vadd.f32 0.0, %v2310
    %v2312 = vpop.f32.mrf.mxu0
    %v2313 = vadd.f32 0.0, %v2312
    %2314 = vdwg.mxu0
    %v2332 = vunpack.c.l.b16 %v2199
    %v2333 = vunpack.c.l.b16 %v2200
    %v2334 = vunpack.c.l.b16 %v2201
    %v2335 = vunpack.c.l.b16 %v2202
    %v2336 = vunpack.c.l.b16 %v2203
    %v2337 = vunpack.c.l.b16 %v2204
    %v2338 = vunpack.c.l.b16 %v2205
    %v2339 = vunpack.c.l.b16 %v2206
    %v2340 = vunpack.c.l.b16 %v2207
    %v2341 = vunpack.c.l.b16 %v2208
    %v2342 = vunpack.c.l.b16 %v2209
    %v2343 = vunpack.c.l.b16 %v2210
    %v2344 = vunpack.c.l.b16 %v2211
    %v2345 = vunpack.c.l.b16 %v2212
    %v2346 = vunpack.c.l.b16 %v2213
    %v2347 = vunpack.c.l.b16 %v2214
    %v2348 = vpack.c.b16 %v2333, %v2332
    %v2349 = vpack.c.b16 %v2335, %v2334
    %v2350 = vpack.c.b16 %v2337, %v2336
    %v2351 = vpack.c.b16 %v2339, %v2338
    %v2352 = vpack.c.b16 %v2341, %v2340
    %v2353 = vpack.c.b16 %v2343, %v2342
    %v2354 = vpack.c.b16 %v2345, %v2344
    %v2355 = vpack.c.b16 %v2347, %v2346
    %2364 = vmatpush.bf16.msra.mxu0 %v2355
    %2365 = vmatpush.bf16.msra.mxu0 %v2354
    %2366 = vmatpush.bf16.msra.mxu0 %v2353
    %2367 = vmatpush.bf16.msra.mxu0 %v2352
    %2368 = vmatpush.bf16.msra.mxu0 %v2351
    %2369 = vmatpush.bf16.msra.mxu0 %v2350
    %2370 = vmatpush.bf16.msra.mxu0 %v2349
    %2371 = vmatpush.bf16.msra.mxu0 %v2348
    %2372 = vmatmul.bf16.gmra.mxu0 %v2238
    %v2373 = vpop.f32.mrf.mxu0
    %v2374 = vadd.f32 %v2311, %v2373
    %v2375 = vpop.f32.mrf.mxu0
    %v2376 = vadd.f32 %v2313, %v2375
    %2377 = vdwg.mxu0
    %v2378 = vld [vmem:[%s97] sm:$0xf]
    %v2379 = vld [vmem:[%s97 + $0x4] sm:$0xf]
    %v2380 = vld [vmem:[%s5] sm:$0xf]
    %v2381 = vld [vmem:[%s5 + $0x4] sm:$0xf]
    %v2382 = vld [vmem:[%s5 + $0x8] sm:$0xf]
    %v2383 = vld [vmem:[%s5 + $0xc] sm:$0xf]
    %v2384 = vld [vmem:[%s5 + $0x10] sm:$0xf]
    %v2385 = vld [vmem:[%s5 + $0x14] sm:$0xf]
    %v2386 = vld [vmem:[%s5 + $0x18] sm:$0xf]
    %v2387 = vld [vmem:[%s5 + $0x1c] sm:$0xf]
    %v2388 = vld [vmem:[%s5 + $0x20] sm:$0xf]
    %v2389 = vld [vmem:[%s5 + $0x24] sm:$0xf]
    %v2390 = vld [vmem:[%s5 + $0x28] sm:$0xf]
    %v2391 = vld [vmem:[%s5 + $0x2c] sm:$0xf]
    %v2392 = vld [vmem:[%s5 + $0x30] sm:$0xf]
    %v2393 = vld [vmem:[%s5 + $0x34] sm:$0xf]
    %v2394 = vld [vmem:[%s5 + $0x38] sm:$0xf]
    %v2395 = vld [vmem:[%s5 + $0x3c] sm:$0xf]
    %v2398 = vunpack.c.l.b16 %v2378
    %v2399 = vunpack.c.l.b16 %v2379
    %v2400 = vpack.c.b16 %v2399, %v2398
    %v2418 = vunpack.c.l.b16 %v2380
    %v2419 = vunpack.c.l.b16 %v2381
    %v2420 = vunpack.c.l.b16 %v2382
    %v2421 = vunpack.c.l.b16 %v2383
    %v2422 = vunpack.c.l.b16 %v2384
    %v2423 = vunpack.c.l.b16 %v2385
    %v2424 = vunpack.c.l.b16 %v2386
    %v2425 = vunpack.c.l.b16 %v2387
    %v2426 = vunpack.c.l.b16 %v2388
    %v2427 = vunpack.c.l.b16 %v2389
    %v2428 = vunpack.c.l.b16 %v2390
    %v2429 = vunpack.c.l.b16 %v2391
    %v2430 = vunpack.c.l.b16 %v2392
    %v2431 = vunpack.c.l.b16 %v2393
    %v2432 = vunpack.c.l.b16 %v2394
    %v2433 = vunpack.c.l.b16 %v2395
    %v2434 = vpack.c.b16 %v2419, %v2418
    %v2435 = vpack.c.b16 %v2421, %v2420
    %v2436 = vpack.c.b16 %v2423, %v2422
    %v2437 = vpack.c.b16 %v2425, %v2424
    %v2438 = vpack.c.b16 %v2427, %v2426
    %v2439 = vpack.c.b16 %v2429, %v2428
    %v2440 = vpack.c.b16 %v2431, %v2430
    %v2441 = vpack.c.b16 %v2433, %v2432
    %2450 = vmatpush.bf16.msra.mxu0 %v2441
    %2451 = vmatpush.bf16.msra.mxu0 %v2440
    %2452 = vmatpush.bf16.msra.mxu0 %v2439
    %2453 = vmatpush.bf16.msra.mxu0 %v2438
    %2454 = vmatpush.bf16.msra.mxu0 %v2437
    %2455 = vmatpush.bf16.msra.mxu0 %v2436
    %2456 = vmatpush.bf16.msra.mxu0 %v2435
    %2457 = vmatpush.bf16.msra.mxu0 %v2434
    %2458 = vmatmul.bf16.gmra.mxu0 %v2400
    %v2459 = vpop.f32.mrf.mxu0
    %v2460 = vadd.f32 0.0, %v2459
    %v2461 = vpop.f32.mrf.mxu0
    %v2462 = vadd.f32 0.0, %v2461
    %2463 = vdwg.mxu0
    %v2464 = vld [vmem:[%s6] sm:$0x1]
    %v2466 = vperm.slane %v2464, 0
    %v2468 = vmul.f32 %v2460, %v2466
    %v2469 = vmul.f32 %v2462, %v2466
    %v2470 = vld [vmem:[%s7] sm:$0x1]
    %v2472 = vperm.slane %v2470, 0
    %v2474 = vadd.f32 %v2468, %v2472
    %v2475 = vadd.f32 %v2469, %v2472
    %v2476 = vmax.f32 %v2474, 0.0
    %v2477 = vmax.f32 %v2475, 0.0
    %v2478 = vadd.f32 %v2374, %v2476
    %v2479 = vadd.f32 %v2376, %v2477
    %s2480 = scalar_lea.vmem %s8, 16
    %2481 = vst [vmem:[%s2480] sm:$0xff] %v2478
    %2482 = vst [vmem:[%s2480 + $0x8] sm:$0xff] %v2479
    // Predicated region
    $region50: #{_lambda_.1} parent=1 // pred_check
      _
    $region51: #{_lambda_.1} parent=1 // pred_check_branch
      %2484 = sbr.rel (0) target = $region53
    $region52: #{_lambda_.1} parent=1 // pred_region
      _
    $region53: #{_lambda_.1} parent=1 // pred_fallthru
      _
    // Predicated region
    $region54: #{_lambda_.1} parent=1 // pred_check
      _
    $region55: #{_lambda_.1} parent=1 // pred_check_branch
      %2486 = sbr.rel (0) target = $region57
    $region56: #{_lambda_.1} parent=1 // pred_region
      _
    $region57: #{_lambda_.1} parent=1 // pred_fallthru
      _
    %2487 = vsyncpa [#allocation5], 1
    %2488 = vsyncpa [#allocation7], 1
    %2489 = vsyncpa [#allocation10], 1

</llo_original>
